<compile_context>
chip_gen: v5e
topology: v5e:2x2
jax: 0.10.0
libtpu: 0.0.40
codegen_flags: <defaults>
</compile_context>

<pallas_src>
import jax
import jax.numpy as jnp
from jax.experimental import pallas as pl
from jax.experimental.pallas import tpu as pltpu

EPS = 1e-5
VMEM_LIMIT = 32 * 1024 * 1024  # explicit scoped-VMEM budget (safe on v5e/v6e/v7x)


# ---------------------------------------------------------------------------
# Pallas kernels
# ---------------------------------------------------------------------------
def bn_relu_kernel(x_ref, scale_ref, shift_ref, o_ref):
    # out = relu(x * scale + shift)   (per-lane scale/shift, broadcast over rows)
    y = jnp.maximum(x_ref[...] * scale_ref[...] + shift_ref[...], 0.0)
    o_ref[...] = y.astype(o_ref.dtype)


def mm_bias_relu_kernel(a_ref, w_ref, b_ref, o_ref, acc_ref):
    # conv1 as tiled matmul; BN2 already folded into w/b -> epilogue = add+relu
    @pl.when(pl.program_id(2) == 0)
    def _():
        acc_ref[...] = jnp.zeros_like(acc_ref)

    acc_ref[...] += jnp.dot(a_ref[...], w_ref[...],
                            preferred_element_type=jnp.float32)

    @pl.when(pl.program_id(2) == pl.num_programs(2) - 1)
    def _():
        o_ref[...] = jnp.maximum(acc_ref[...] + b_ref[...], 0.0).astype(o_ref.dtype)


def mm_bias_kernel(a_ref, w_ref, b_ref, o_ref, acc_ref):
    # plain matmul + bias (used for the 1x1 link conv)
    @pl.when(pl.program_id(2) == 0)
    def _():
        acc_ref[...] = jnp.zeros_like(acc_ref)

    acc_ref[...] += jnp.dot(a_ref[...], w_ref[...],
                            preferred_element_type=jnp.float32)

    @pl.when(pl.program_id(2) == pl.num_programs(2) - 1)
    def _():
        o_ref[...] = (acc_ref[...] + b_ref[...]).astype(o_ref.dtype)


def mm_bias_res_kernel(a_ref, w_ref, b_ref, res_ref, o_ref, acc_ref):
    # conv2 + bias + residual (identity x or link-conv output), f32 epilogue
    @pl.when(pl.program_id(2) == 0)
    def _():
        acc_ref[...] = jnp.zeros_like(acc_ref)

    acc_ref[...] += jnp.dot(a_ref[...], w_ref[...],
                            preferred_element_type=jnp.float32)

    @pl.when(pl.program_id(2) == pl.num_programs(2) - 1)
    def _():
        o_ref[...] = (acc_ref[...] + b_ref[...]
                      + res_ref[...].astype(jnp.float32)).astype(o_ref.dtype)


# ---------------------------------------------------------------------------
# pallas_call wrappers
# ---------------------------------------------------------------------------
def _round_up(x, m):
    return (x + m - 1) // m * m


def bn_relu_call(x2d, scale, shift, tm=256):
    """x2d: (M, L) f32; scale/shift: (L,) broadcast over rows.  bf16 output."""
    M, L = x2d.shape
    tm_e = min(tm, _round_up(M, 16))
    Mp = _round_up(M, tm_e)
    xp = jnp.pad(x2d, ((0, Mp - M), (0, 0)))
    out = pl.pallas_call(
        bn_relu_kernel,
        out_shape=jax.ShapeDtypeStruct((Mp, L), jnp.bfloat16),
        grid=(Mp // tm_e,),
        in_specs=[pl.BlockSpec((tm_e, L), lambda i: (i, 0)),
                  pl.BlockSpec((1, L), lambda i: (0, 0)),
                  pl.BlockSpec((1, L), lambda i: (0, 0))],
        out_specs=pl.BlockSpec((tm_e, L), lambda i: (i, 0)),
        compiler_params=pltpu.CompilerParams(
            dimension_semantics=("parallel",),
            vmem_limit_bytes=VMEM_LIMIT),
    )(xp, scale.reshape(1, L).astype(jnp.float32),
      shift.reshape(1, L).astype(jnp.float32))
    return out[:M]


def _mm_call(kernel_fn, a, w, bias, res=None, *, tm=256, tn=256, tk=1024,
             out_dtype=jnp.float32):
    """Tiled (M,K)x(K,N) matmul with fused epilogue.

    A/W are bf16 on the MXU; accumulation is f32 in VMEM scratch.  M is padded
    to a 16-multiple (bf16 sublane pack), N/K to 128-multiples, all with zeros
    (lane-dense, no masking).  Output dtype selectable so producers can emit
    bf16 directly for the next conv's A stream.
    """
    M, K = a.shape
    Kw, N = w.shape
    assert K == Kw
    tm_e = min(tm, _round_up(M, 16))
    tn_e = min(tn, _round_up(N, 128))
    tk_e = min(tk, _round_up(K, 128))
    Mp, Np, Kp = _round_up(M, tm_e), _round_up(N, tn_e), _round_up(K, tk_e)

    a_p = jnp.pad(a.astype(jnp.bfloat16), ((0, Mp - M), (0, Kp - K)))
    w_p = jnp.pad(w.astype(jnp.bfloat16), ((0, Kp - K), (0, Np - N)))
    b_p = jnp.pad(bias.reshape(1, -1).astype(jnp.float32),
                  ((0, 0), (0, Np - N)))

    in_specs = [pl.BlockSpec((tm_e, tk_e), lambda i, j, k: (i, k)),
                pl.BlockSpec((tk_e, tn_e), lambda i, j, k: (k, j)),
                pl.BlockSpec((1, tn_e), lambda i, j, k: (0, j))]
    args = [a_p, w_p, b_p]
    if res is not None:
        res_p = jnp.pad(res.astype(jnp.bfloat16), ((0, Mp - M), (0, Np - N)))
        in_specs.append(pl.BlockSpec((tm_e, tn_e), lambda i, j, k: (i, j)))
        args.append(res_p)

    out = pl.pallas_call(
        kernel_fn,
        out_shape=jax.ShapeDtypeStruct((Mp, Np), out_dtype),
        grid=(Mp // tm_e, Np // tn_e, Kp // tk_e),
        in_specs=in_specs,
        out_specs=pl.BlockSpec((tm_e, tn_e), lambda i, j, k: (i, j)),
        scratch_shapes=[pltpu.VMEM((tm_e, tn_e), jnp.float32)],
        compiler_params=pltpu.CompilerParams(
            dimension_semantics=("parallel", "parallel", "arbitrary"),
            vmem_limit_bytes=VMEM_LIMIT),
    )(*args)
    return out[:M, :N]


# ---------------------------------------------------------------------------
# Plain-JAX glue: im2col, weight packing, parameter init, block forward
# ---------------------------------------------------------------------------
def im2col(x_nhwc, ksize, stride, pad):
    """x: (N, H, W, C) -> (N*Ho*Wo, ksize*ksize*C), row order (dy, dx, c)."""
    N, H, W, C = x_nhwc.shape
    xp = jnp.pad(x_nhwc, ((0, 0), (pad, pad), (pad, pad), (0, 0)))
    Ho = (H + 2 * pad - ksize) // stride + 1
    Wo = (W + 2 * pad - ksize) // stride + 1
    cols = []
    for dy in range(ksize):
        for dx in range(ksize):
            cols.append(xp[:, dy:dy + stride * Ho:stride,
                           dx:dx + stride * Wo:stride, :])
    patches = jnp.concatenate(cols, axis=-1)  # (N, Ho, Wo, k*k*C)
    return patches.reshape(N * Ho * Wo, ksize * ksize * C), Ho, Wo


def _pack_conv_weight(w_torch):
    """(Cout, Cin, kh, kw) torch weight -> (kh*kw*Cin, Cout), row order (dy,dx,c)."""
    cout, cin, kh, kw = w_torch.shape
    w = jnp.transpose(w_torch, (2, 3, 1, 0))  # (kh, kw, cin, cout)
    return w.reshape(kh * kw * cin, cout)


def _kaiming_normal(key, shape, fan_in):
    std = (2.0 / fan_in) ** 0.5
    return std * jax.random.normal(key, shape, dtype=jnp.float32)


def init_block_params(key, inplanes, outplanes, stride):
    """Matches init_parameters(): kaiming_normal conv weights, zero conv bias,
    uniform BN weights, zero BN bias; fresh BN running stats (mean 0, var 1)."""
    ks = jax.random.split(key, 6)
    p = {}
    p["bn1_w"] = jax.random.uniform(ks[0], (inplanes,), dtype=jnp.float32)
    p["bn1_b"] = jnp.zeros((inplanes,), jnp.float32)
    p["bn1_mean"] = jnp.zeros((inplanes,), jnp.float32)
    p["bn1_var"] = jnp.ones((inplanes,), jnp.float32)
    p["bn2_w"] = jax.random.uniform(ks[1], (outplanes,), dtype=jnp.float32)
    p["bn2_b"] = jnp.zeros((outplanes,), jnp.float32)
    p["bn2_mean"] = jnp.zeros((outplanes,), jnp.float32)
    p["bn2_var"] = jnp.ones((outplanes,), jnp.float32)
    p["w1"] = _kaiming_normal(ks[2], (outplanes, inplanes, 3, 3), inplanes * 9)
    p["b1"] = jnp.zeros((outplanes,), jnp.float32)
    p["w2"] = _kaiming_normal(ks[3], (outplanes, outplanes, 3, 3), outplanes * 9)
    p["b2"] = jnp.zeros((outplanes,), jnp.float32)
    has_link = not (inplanes == outplanes and stride == 1)
    if has_link:
        p["wl"] = _kaiming_normal(ks[4], (outplanes, inplanes, 1, 1), inplanes)
        p["bl"] = jnp.zeros((outplanes,), jnp.float32)
    return p, has_link


def wideresnet_block_forward(x_nchw, params, stride, has_link):
    x = jnp.transpose(x_nchw, (0, 2, 3, 1)).astype(jnp.float32)  # NHWC
    N, H, W, Cin = x.shape
    Cout = params["w1"].shape[0]

    # --- bn1 (eval, running stats) + relu: lane-dense (N*H, W*Cin), bf16 out ---
    s1 = params["bn1_w"] / jnp.sqrt(params["bn1_var"] + EPS)
    sh1 = params["bn1_b"] - params["bn1_mean"] * s1
    out0_2d = bn_relu_call(x.reshape(N * H, W * Cin),
                           jnp.tile(s1, W), jnp.tile(sh1, W))
    out0 = out0_2d.reshape(N, H, W, Cin)                         # bf16

    # --- conv1 (3x3, stride, pad 1) with BN2(eval)+ReLU folded in; bf16 out ---
    a1, Ho, Wo = im2col(out0, 3, stride, 1)                      # (M1, 9*Cin) bf16
    s2 = params["bn2_w"] / jnp.sqrt(params["bn2_var"] + EPS)
    w1m = _pack_conv_weight(params["w1"]) * s2[None, :]          # fold BN2 scale
    bias1 = s2 * (params["b1"] - params["bn2_mean"]) + params["bn2_b"]
    mid = _mm_call(mm_bias_relu_kernel, a1, w1m, bias1, out_dtype=jnp.bfloat16)
    # dropout: eval-mode identity (see TODO at top of file)
    mid = mid.reshape(N, Ho, Wo, Cout)

    # --- residual branch ---
    if has_link:
        # 1x1 strided link conv as a small separate matmul; its bf16 output is
        # fed as `res` into conv2's epilogue (no K-concat copy of the big A).
        a_link = out0[:, ::stride, ::stride, :].reshape(N * Ho * Wo, Cin)
        wl = params["wl"].reshape(Cout, Cin).T                   # (Cin, Cout)
        res = _mm_call(mm_bias_kernel, a_link, wl, params["bl"],
                       out_dtype=jnp.bfloat16)
    else:
        res = x.reshape(N * H * W, Cin)                          # Cin == Cout here

    # --- conv2 (3x3, stride 1, pad 1) + bias + residual ---
    a2, Ho2, Wo2 = im2col(mid, 3, 1, 1)                          # (M2, 9*Cout) bf16
    w2m = _pack_conv_weight(params["w2"])
    out2d = _mm_call(mm_bias_res_kernel, a2, w2m, params["b2"], res=res,
                     out_dtype=jnp.float32)

    out = out2d.reshape(N, Ho2, Wo2, Cout)
    # TODO(synk): emit NCHW directly from the conv2 kernel to skip this transpose.
    return jnp.transpose(out, (0, 3, 1, 2))                      # back to NCHW


# ---------------------------------------------------------------------------
# Pure-JAX f32 reference (lax.conv) for validation
# ---------------------------------------------------------------------------
def reference_forward(x_nchw, p, stride, has_link):
    x = jnp.transpose(x_nchw, (0, 2, 3, 1)).astype(jnp.float32)

    def bn(v, gamma, beta, mean, var):
        return gamma * (v - mean) / jnp.sqrt(var + EPS) + beta

    def conv(v, w_torch, b, st, pad):
        w = jnp.transpose(w_torch, (2, 3, 1, 0))  # HWIO
        y = jax.lax.conv_general_dilated(
            v, w, (st, st), [(pad, pad), (pad, pad)],
            dimension_numbers=("NHWC", "HWIO", "NHWC"),
            precision=jax.lax.Precision.HIGHEST)
        return y + b

    out0 = jax.nn.relu(bn(x, p["bn1_w"], p["bn1_b"], p["bn1_mean"], p["bn1_var"]))
    out = conv(out0, p["w1"], p["b1"], stride, 1)
    out = jax.nn.relu(bn(out, p["bn2_w"], p["bn2_b"], p["bn2_mean"], p["bn2_var"]))
    out = conv(out, p["w2"], p["b2"], 1, 1)
    out = out + (conv(out0, p["wl"], p["bl"], stride, 0) if has_link else x)
    return jnp.transpose(out, (0, 3, 1, 2))


# ---------------------------------------------------------------------------
if __name__ == "__main__":
    fwd = jax.jit(wideresnet_block_forward, static_argnums=(2, 3))

    root = jax.random.PRNGKey(0)
    k_param1, k_param2, k_x1, k_x2 = jax.random.split(root, 4)

    # Config A: link path (inplanes != outplanes, stride 2)
    N, Cin, Cout, H, W, stride = 2, 4, 8, 16, 16, 2
    params_a, link_a = init_block_params(k_param1, Cin, Cout, stride)
    x_a = jax.random.normal(k_x1, (N, Cin, H, W), dtype=jnp.float32)
    out_a = jax.block_until_ready(fwd(x_a, params_a, stride, link_a))
    ref_a = reference_forward(x_a, params_a, stride, link_a)
    assert out_a.shape == (N, Cout, H // stride, W // stride)
    err_a = float(jnp.max(jnp.abs(out_a - ref_a)))
    tol_a = 2e-2 * (1.0 + float(jnp.max(jnp.abs(ref_a))))  # bf16 MXU tolerance
    assert err_a < tol_a, (err_a, tol_a)

    # Config B: identity path (inplanes == outplanes, stride 1)
    params_b, link_b = init_block_params(k_param2, 4, 4, 1)
    x_b = jax.random.normal(k_x2, (2, 4, 16, 16), dtype=jnp.float32)
    out_b = jax.block_until_ready(fwd(x_b, params_b, 1, link_b))
    ref_b = reference_forward(x_b, params_b, 1, link_b)
    assert out_b.shape == (2, 4, 16, 16)
    err_b = float(jnp.max(jnp.abs(out_b - ref_b)))
    tol_b = 2e-2 * (1.0 + float(jnp.max(jnp.abs(ref_b))))
    assert err_b < tol_b, (err_b, tol_b)

    print("KERNEL_OK")
</pallas_src>

<mosaic_0001>
module attributes {stable_mosaic.version = 11 : i64} {
  func.func @bn_relu_kernel(%arg0: i32, %arg1: memref<32x64xf32, #tpu.memory_space<vmem>>, %arg2: memref<1x64xf32, #tpu.memory_space<vmem>>, %arg3: memref<1x64xf32, #tpu.memory_space<vmem>>, %arg4: memref<32x64xbf16, #tpu.memory_space<vmem>>) attributes {dimension_semantics = [#tpu.dimension_semantics<parallel>], iteration_bounds = array<i64: 1>, scalar_prefetch = 0 : i64, scratch_operands = 0 : i64, tpu.core_type = #tpu.core_type<tc>, window_params = [{transform_indices = @transform_0, window_bounds = array<i64: 32, 64>}, {pipeline_mode = #tpu.pipeline_mode<synchronous>, transform_indices = @transform_1, window_bounds = array<i64: 1, 64>}, {pipeline_mode = #tpu.pipeline_mode<synchronous>, transform_indices = @transform_2, window_bounds = array<i64: 1, 64>}, {transform_indices = @transform_3, window_bounds = array<i64: 32, 64>}]} {
    %c0 = arith.constant 0 : index
    %c0_0 = arith.constant 0 : index
    %0 = vector.load %arg1[%c0, %c0_0] : memref<32x64xf32, #tpu.memory_space<vmem>>, vector<32x64xf32>
    %c0_1 = arith.constant 0 : index
    %c0_2 = arith.constant 0 : index
    %1 = vector.load %arg2[%c0_1, %c0_2] : memref<1x64xf32, #tpu.memory_space<vmem>>, vector<1x64xf32>
    %2 = vector.broadcast %1 : vector<1x64xf32> to vector<32x64xf32>
    %3 = arith.mulf %0, %2 : vector<32x64xf32>
    %c0_3 = arith.constant 0 : index
    %c0_4 = arith.constant 0 : index
    %4 = vector.load %arg3[%c0_3, %c0_4] : memref<1x64xf32, #tpu.memory_space<vmem>>, vector<1x64xf32>
    %5 = vector.broadcast %4 : vector<1x64xf32> to vector<32x64xf32>
    %6 = arith.addf %3, %5 : vector<32x64xf32>
    %cst = arith.constant 0.000000e+00 : f32
    %7 = vector.broadcast %cst : f32 to vector<32x64xf32>
    %8 = arith.maximumf %6, %7 : vector<32x64xf32>
    %9 = arith.truncf %8 : vector<32x64xf32> to vector<32x64xbf16>
    %c0_5 = arith.constant 0 : index
    %c0_6 = arith.constant 0 : index
    %10 = vector.load %arg4[%c0_5, %c0_6] : memref<32x64xbf16, #tpu.memory_space<vmem>>, vector<32x64xbf16>
    tpu.vector_store %arg4[%c0_5, %c0_6], %9 {strides = array<i32>} : memref<32x64xbf16, #tpu.memory_space<vmem>>, vector<32x64xbf16>,
    return
  }
  func.func @transform_0(%arg0: i32) -> (i32, i32) {
    %c0_i32 = arith.constant 0 : i32
    %c0_i32_0 = arith.constant 0 : i32
    return %arg0, %c0_i32 : i32, i32
  }
  func.func @transform_1(%arg0: i32) -> (i32, i32) {
    %c0_i32 = arith.constant 0 : i32
    %c0_i32_0 = arith.constant 0 : i32
    %c0_i32_1 = arith.constant 0 : i32
    return %c0_i32, %c0_i32_0 : i32, i32
  }
  func.func @transform_2(%arg0: i32) -> (i32, i32) {
    %c0_i32 = arith.constant 0 : i32
    %c0_i32_0 = arith.constant 0 : i32
    %c0_i32_1 = arith.constant 0 : i32
    return %c0_i32, %c0_i32_0 : i32, i32
  }
  func.func @transform_3(%arg0: i32) -> (i32, i32) {
    %c0_i32 = arith.constant 0 : i32
    %c0_i32_0 = arith.constant 0 : i32
    return %arg0, %c0_i32 : i32, i32
  }
}

module attributes {stable_mosaic.version = 11 : i64} {
  func.func @mm_bias_relu_kernel(%arg0: i32, %arg1: i32, %arg2: i32, %arg3: memref<128x128xbf16, #tpu.memory_space<vmem>>, %arg4: memref<128x128xbf16, #tpu.memory_space<vmem>>, %arg5: memref<1x128xf32, #tpu.memory_space<vmem>>, %arg6: memref<128x128xbf16, #tpu.memory_space<vmem>>, %arg7: memref<128x128xf32, #tpu.memory_space<vmem>>) attributes {dimension_semantics = [#tpu.dimension_semantics<parallel>, #tpu.dimension_semantics<parallel>, #tpu.dimension_semantics<arbitrary>], iteration_bounds = array<i64: 1, 1, 1>, scalar_prefetch = 0 : i64, scratch_operands = 1 : i64, tpu.core_type = #tpu.core_type<tc>, window_params = [{transform_indices = @transform_0, window_bounds = array<i64: 128, 128>}, {transform_indices = @transform_1, window_bounds = array<i64: 128, 128>}, {transform_indices = @transform_2, window_bounds = array<i64: 1, 128>}, {transform_indices = @transform_3, window_bounds = array<i64: 128, 128>}]} {
    %c0_i32 = arith.constant 0 : i32
    %0 = arith.cmpi eq, %arg2, %c0_i32 : i32
    %1 = arith.extui %0 : i1 to i32
    %c0_i32_0 = arith.constant 0 : i32
    %2 = arith.cmpi ne, %1, %c0_i32_0 : i32
    scf.if %2 {
      %cst_10 = arith.constant 0.000000e+00 : f32
      %12 = vector.broadcast %cst_10 : f32 to vector<128x128xf32>
      %c0_11 = arith.constant 0 : index
      %c0_12 = arith.constant 0 : index
      %13 = vector.load %arg7[%c0_11, %c0_12] : memref<128x128xf32, #tpu.memory_space<vmem>>, vector<128x128xf32>
      tpu.vector_store %arg7[%c0_11, %c0_12], %12 {strides = array<i32>} : memref<128x128xf32, #tpu.memory_space<vmem>>, vector<128x128xf32>,
    } else {
    }
    %c0 = arith.constant 0 : index
    %c0_1 = arith.constant 0 : index
    %3 = vector.load %arg7[%c0, %c0_1] : memref<128x128xf32, #tpu.memory_space<vmem>>, vector<128x128xf32>
    %c0_2 = arith.constant 0 : index
    %c0_3 = arith.constant 0 : index
    %4 = vector.load %arg3[%c0_2, %c0_3] : memref<128x128xbf16, #tpu.memory_space<vmem>>, vector<128x128xbf16>
    %c0_4 = arith.constant 0 : index
    %c0_5 = arith.constant 0 : index
    %5 = vector.load %arg4[%c0_4, %c0_5] : memref<128x128xbf16, #tpu.memory_space<vmem>>, vector<128x128xbf16>
    %cst = arith.constant dense<0.000000e+00> : vector<128x128xf32>
    %6 = tpu.matmul %4, %5, %cst {dimension_numbers = #tpu.dot_dimension_numbers<[1], [0], [0], [1], [0, 0, 1, 1], [], []>} : vector<128x128xbf16>, vector<128x128xbf16>, vector<128x128xf32> -> vector<128x128xf32>
    %7 = arith.addf %3, %6 : vector<128x128xf32>
    %c0_6 = arith.constant 0 : index
    %c0_7 = arith.constant 0 : index
    %8 = vector.load %arg7[%c0_6, %c0_7] : memref<128x128xf32, #tpu.memory_space<vmem>>, vector<128x128xf32>
    tpu.vector_store %arg7[%c0_6, %c0_7], %7 {strides = array<i32>} : memref<128x128xf32, #tpu.memory_space<vmem>>, vector<128x128xf32>,
    %c0_i32_8 = arith.constant 0 : i32
    %9 = arith.cmpi eq, %arg2, %c0_i32_8 : i32
    %10 = arith.extui %9 : i1 to i32
    %c0_i32_9 = arith.constant 0 : i32
    %11 = arith.cmpi ne, %10, %c0_i32_9 : i32
    scf.if %11 {
      %c0_10 = arith.constant 0 : index
      %c0_11 = arith.constant 0 : index
      %12 = vector.load %arg7[%c0_10, %c0_11] : memref<128x128xf32, #tpu.memory_space<vmem>>, vector<128x128xf32>
      %c0_12 = arith.constant 0 : index
      %c0_13 = arith.constant 0 : index
      %13 = vector.load %arg5[%c0_12, %c0_13] : memref<1x128xf32, #tpu.memory_space<vmem>>, vector<1x128xf32>
      %14 = vector.broadcast %13 : vector<1x128xf32> to vector<128x128xf32>
      %15 = arith.addf %12, %14 : vector<128x128xf32>
      %cst_14 = arith.constant 0.000000e+00 : f32
      %16 = vector.broadcast %cst_14 : f32 to vector<128x128xf32>
      %17 = arith.maximumf %15, %16 : vector<128x128xf32>
      %18 = arith.truncf %17 : vector<128x128xf32> to vector<128x128xbf16>
      %c0_15 = arith.constant 0 : index
      %c0_16 = arith.constant 0 : index
      %19 = vector.load %arg6[%c0_15, %c0_16] : memref<128x128xbf16, #tpu.memory_space<vmem>>, vector<128x128xbf16>
      tpu.vector_store %arg6[%c0_15, %c0_16], %18 {strides = array<i32>} : memref<128x128xbf16, #tpu.memory_space<vmem>>, vector<128x128xbf16>,
    } else {
    }
    return
  }
  func.func @transform_0(%arg0: i32, %arg1: i32, %arg2: i32) -> (i32, i32) {
    %c0_i32 = arith.constant 0 : i32
    return %arg0, %arg2 : i32, i32
  }
  func.func @transform_1(%arg0: i32, %arg1: i32, %arg2: i32) -> (i32, i32) {
    %c0_i32 = arith.constant 0 : i32
    return %arg2, %arg1 : i32, i32
  }
  func.func @transform_2(%arg0: i32, %arg1: i32, %arg2: i32) -> (i32, i32) {
    %c0_i32 = arith.constant 0 : i32
    %c0_i32_0 = arith.constant 0 : i32
    return %c0_i32, %arg1 : i32, i32
  }
  func.func @transform_3(%arg0: i32, %arg1: i32, %arg2: i32) -> (i32, i32) {
    %c0_i32 = arith.constant 0 : i32
    return %arg0, %arg1 : i32, i32
  }
}

module attributes {stable_mosaic.version = 11 : i64} {
  func.func @mm_bias_kernel(%arg0: i32, %arg1: i32, %arg2: i32, %arg3: memref<128x128xbf16, #tpu.memory_space<vmem>>, %arg4: memref<128x128xbf16, #tpu.memory_space<vmem>>, %arg5: memref<1x128xf32, #tpu.memory_space<vmem>>, %arg6: memref<128x128xbf16, #tpu.memory_space<vmem>>, %arg7: memref<128x128xf32, #tpu.memory_space<vmem>>) attributes {dimension_semantics = [#tpu.dimension_semantics<parallel>, #tpu.dimension_semantics<parallel>, #tpu.dimension_semantics<arbitrary>], iteration_bounds = array<i64: 1, 1, 1>, scalar_prefetch = 0 : i64, scratch_operands = 1 : i64, tpu.core_type = #tpu.core_type<tc>, window_params = [{transform_indices = @transform_0, window_bounds = array<i64: 128, 128>}, {transform_indices = @transform_1, window_bounds = array<i64: 128, 128>}, {transform_indices = @transform_2, window_bounds = array<i64: 1, 128>}, {transform_indices = @transform_3, window_bounds = array<i64: 128, 128>}]} {
    %c0_i32 = arith.constant 0 : i32
    %0 = arith.cmpi eq, %arg2, %c0_i32 : i32
    %1 = arith.extui %0 : i1 to i32
    %c0_i32_0 = arith.constant 0 : i32
    %2 = arith.cmpi ne, %1, %c0_i32_0 : i32
    scf.if %2 {
      %cst_10 = arith.constant 0.000000e+00 : f32
      %12 = vector.broadcast %cst_10 : f32 to vector<128x128xf32>
      %c0_11 = arith.constant 0 : index
      %c0_12 = arith.constant 0 : index
      %13 = vector.load %arg7[%c0_11, %c0_12] : memref<128x128xf32, #tpu.memory_space<vmem>>, vector<128x128xf32>
      tpu.vector_store %arg7[%c0_11, %c0_12], %12 {strides = array<i32>} : memref<128x128xf32, #tpu.memory_space<vmem>>, vector<128x128xf32>,
    } else {
    }
    %c0 = arith.constant 0 : index
    %c0_1 = arith.constant 0 : index
    %3 = vector.load %arg7[%c0, %c0_1] : memref<128x128xf32, #tpu.memory_space<vmem>>, vector<128x128xf32>
    %c0_2 = arith.constant 0 : index
    %c0_3 = arith.constant 0 : index
    %4 = vector.load %arg3[%c0_2, %c0_3] : memref<128x128xbf16, #tpu.memory_space<vmem>>, vector<128x128xbf16>
    %c0_4 = arith.constant 0 : index
    %c0_5 = arith.constant 0 : index
    %5 = vector.load %arg4[%c0_4, %c0_5] : memref<128x128xbf16, #tpu.memory_space<vmem>>, vector<128x128xbf16>
    %cst = arith.constant dense<0.000000e+00> : vector<128x128xf32>
    %6 = tpu.matmul %4, %5, %cst {dimension_numbers = #tpu.dot_dimension_numbers<[1], [0], [0], [1], [0, 0, 1, 1], [], []>} : vector<128x128xbf16>, vector<128x128xbf16>, vector<128x128xf32> -> vector<128x128xf32>
    %7 = arith.addf %3, %6 : vector<128x128xf32>
    %c0_6 = arith.constant 0 : index
    %c0_7 = arith.constant 0 : index
    %8 = vector.load %arg7[%c0_6, %c0_7] : memref<128x128xf32, #tpu.memory_space<vmem>>, vector<128x128xf32>
    tpu.vector_store %arg7[%c0_6, %c0_7], %7 {strides = array<i32>} : memref<128x128xf32, #tpu.memory_space<vmem>>, vector<128x128xf32>,
    %c0_i32_8 = arith.constant 0 : i32
    %9 = arith.cmpi eq, %arg2, %c0_i32_8 : i32
    %10 = arith.extui %9 : i1 to i32
    %c0_i32_9 = arith.constant 0 : i32
    %11 = arith.cmpi ne, %10, %c0_i32_9 : i32
    scf.if %11 {
      %c0_10 = arith.constant 0 : index
      %c0_11 = arith.constant 0 : index
      %12 = vector.load %arg7[%c0_10, %c0_11] : memref<128x128xf32, #tpu.memory_space<vmem>>, vector<128x128xf32>
      %c0_12 = arith.constant 0 : index
      %c0_13 = arith.constant 0 : index
      %13 = vector.load %arg5[%c0_12, %c0_13] : memref<1x128xf32, #tpu.memory_space<vmem>>, vector<1x128xf32>
      %14 = vector.broadcast %13 : vector<1x128xf32> to vector<128x128xf32>
      %15 = arith.addf %12, %14 : vector<128x128xf32>
      %16 = arith.truncf %15 : vector<128x128xf32> to vector<128x128xbf16>
      %c0_14 = arith.constant 0 : index
      %c0_15 = arith.constant 0 : index
      %17 = vector.load %arg6[%c0_14, %c0_15] : memref<128x128xbf16, #tpu.memory_space<vmem>>, vector<128x128xbf16>
      tpu.vector_store %arg6[%c0_14, %c0_15], %16 {strides = array<i32>} : memref<128x128xbf16, #tpu.memory_space<vmem>>, vector<128x128xbf16>,
    } else {
    }
    return
  }
  func.func @transform_0(%arg0: i32, %arg1: i32, %arg2: i32) -> (i32, i32) {
    %c0_i32 = arith.constant 0 : i32
    return %arg0, %arg2 : i32, i32
  }
  func.func @transform_1(%arg0: i32, %arg1: i32, %arg2: i32) -> (i32, i32) {
    %c0_i32 = arith.constant 0 : i32
    return %arg2, %arg1 : i32, i32
  }
  func.func @transform_2(%arg0: i32, %arg1: i32, %arg2: i32) -> (i32, i32) {
    %c0_i32 = arith.constant 0 : i32
    %c0_i32_0 = arith.constant 0 : i32
    return %c0_i32, %arg1 : i32, i32
  }
  func.func @transform_3(%arg0: i32, %arg1: i32, %arg2: i32) -> (i32, i32) {
    %c0_i32 = arith.constant 0 : i32
    return %arg0, %arg1 : i32, i32
  }
}

module attributes {stable_mosaic.version = 11 : i64} {
  func.func @mm_bias_res_kernel(%arg0: i32, %arg1: i32, %arg2: i32, %arg3: memref<128x128xbf16, #tpu.memory_space<vmem>>, %arg4: memref<128x128xbf16, #tpu.memory_space<vmem>>, %arg5: memref<1x128xf32, #tpu.memory_space<vmem>>, %arg6: memref<128x128xbf16, #tpu.memory_space<vmem>>, %arg7: memref<128x128xf32, #tpu.memory_space<vmem>>, %arg8: memref<128x128xf32, #tpu.memory_space<vmem>>) attributes {dimension_semantics = [#tpu.dimension_semantics<parallel>, #tpu.dimension_semantics<parallel>, #tpu.dimension_semantics<arbitrary>], iteration_bounds = array<i64: 1, 1, 1>, scalar_prefetch = 0 : i64, scratch_operands = 1 : i64, tpu.core_type = #tpu.core_type<tc>, window_params = [{transform_indices = @transform_0, window_bounds = array<i64: 128, 128>}, {transform_indices = @transform_1, window_bounds = array<i64: 128, 128>}, {transform_indices = @transform_2, window_bounds = array<i64: 1, 128>}, {transform_indices = @transform_3, window_bounds = array<i64: 128, 128>}, {transform_indices = @transform_4, window_bounds = array<i64: 128, 128>}]} {
    %c0_i32 = arith.constant 0 : i32
    %0 = arith.cmpi eq, %arg2, %c0_i32 : i32
    %1 = arith.extui %0 : i1 to i32
    %c0_i32_0 = arith.constant 0 : i32
    %2 = arith.cmpi ne, %1, %c0_i32_0 : i32
    scf.if %2 {
      %cst_10 = arith.constant 0.000000e+00 : f32
      %12 = vector.broadcast %cst_10 : f32 to vector<128x128xf32>
      %c0_11 = arith.constant 0 : index
      %c0_12 = arith.constant 0 : index
      %13 = vector.load %arg8[%c0_11, %c0_12] : memref<128x128xf32, #tpu.memory_space<vmem>>, vector<128x128xf32>
      tpu.vector_store %arg8[%c0_11, %c0_12], %12 {strides = array<i32>} : memref<128x128xf32, #tpu.memory_space<vmem>>, vector<128x128xf32>,
    } else {
    }
    %c0 = arith.constant 0 : index
    %c0_1 = arith.constant 0 : index
    %3 = vector.load %arg8[%c0, %c0_1] : memref<128x128xf32, #tpu.memory_space<vmem>>, vector<128x128xf32>
    %c0_2 = arith.constant 0 : index
    %c0_3 = arith.constant 0 : index
    %4 = vector.load %arg3[%c0_2, %c0_3] : memref<128x128xbf16, #tpu.memory_space<vmem>>, vector<128x128xbf16>
    %c0_4 = arith.constant 0 : index
    %c0_5 = arith.constant 0 : index
    %5 = vector.load %arg4[%c0_4, %c0_5] : memref<128x128xbf16, #tpu.memory_space<vmem>>, vector<128x128xbf16>
    %cst = arith.constant dense<0.000000e+00> : vector<128x128xf32>
    %6 = tpu.matmul %4, %5, %cst {dimension_numbers = #tpu.dot_dimension_numbers<[1], [0], [0], [1], [0, 0, 1, 1], [], []>} : vector<128x128xbf16>, vector<128x128xbf16>, vector<128x128xf32> -> vector<128x128xf32>
    %7 = arith.addf %3, %6 : vector<128x128xf32>
    %c0_6 = arith.constant 0 : index
    %c0_7 = arith.constant 0 : index
    %8 = vector.load %arg8[%c0_6, %c0_7] : memref<128x128xf32, #tpu.memory_space<vmem>>, vector<128x128xf32>
    tpu.vector_store %arg8[%c0_6, %c0_7], %7 {strides = array<i32>} : memref<128x128xf32, #tpu.memory_space<vmem>>, vector<128x128xf32>,
    %c0_i32_8 = arith.constant 0 : i32
    %9 = arith.cmpi eq, %arg2, %c0_i32_8 : i32
    %10 = arith.extui %9 : i1 to i32
    %c0_i32_9 = arith.constant 0 : i32
    %11 = arith.cmpi ne, %10, %c0_i32_9 : i32
    scf.if %11 {
      %c0_10 = arith.constant 0 : index
      %c0_11 = arith.constant 0 : index
      %12 = vector.load %arg8[%c0_10, %c0_11] : memref<128x128xf32, #tpu.memory_space<vmem>>, vector<128x128xf32>
      %c0_12 = arith.constant 0 : index
      %c0_13 = arith.constant 0 : index
      %13 = vector.load %arg5[%c0_12, %c0_13] : memref<1x128xf32, #tpu.memory_space<vmem>>, vector<1x128xf32>
      %14 = vector.broadcast %13 : vector<1x128xf32> to vector<128x128xf32>
      %15 = arith.addf %12, %14 : vector<128x128xf32>
      %c0_14 = arith.constant 0 : index
      %c0_15 = arith.constant 0 : index
      %16 = vector.load %arg6[%c0_14, %c0_15] : memref<128x128xbf16, #tpu.memory_space<vmem>>, vector<128x128xbf16>
      %17 = arith.extf %16 : vector<128x128xbf16> to vector<128x128xf32>
      %18 = arith.addf %15, %17 : vector<128x128xf32>
      %c0_16 = arith.constant 0 : index
      %c0_17 = arith.constant 0 : index
      %19 = vector.load %arg7[%c0_16, %c0_17] : memref<128x128xf32, #tpu.memory_space<vmem>>, vector<128x128xf32>
      tpu.vector_store %arg7[%c0_16, %c0_17], %18 {strides = array<i32>} : memref<128x128xf32, #tpu.memory_space<vmem>>, vector<128x128xf32>,
    } else {
    }
    return
  }
  func.func @transform_0(%arg0: i32, %arg1: i32, %arg2: i32) -> (i32, i32) {
    %c0_i32 = arith.constant 0 : i32
    return %arg0, %arg2 : i32, i32
  }
  func.func @transform_1(%arg0: i32, %arg1: i32, %arg2: i32) -> (i32, i32) {
    %c0_i32 = arith.constant 0 : i32
    return %arg2, %arg1 : i32, i32
  }
  func.func @transform_2(%arg0: i32, %arg1: i32, %arg2: i32) -> (i32, i32) {
    %c0_i32 = arith.constant 0 : i32
    %c0_i32_0 = arith.constant 0 : i32
    return %c0_i32, %arg1 : i32, i32
  }
  func.func @transform_3(%arg0: i32, %arg1: i32, %arg2: i32) -> (i32, i32) {
    %c0_i32 = arith.constant 0 : i32
    return %arg0, %arg1 : i32, i32
  }
  func.func @transform_4(%arg0: i32, %arg1: i32, %arg2: i32) -> (i32, i32) {
    %c0_i32 = arith.constant 0 : i32
    return %arg0, %arg1 : i32, i32
  }
}

</mosaic_0001>

<llo_original>
// kernel: tile.13
$region0: #{tile.13}
  #allocation0 [shape = 's32[1]{0}', space=sflag, size = 0x4, scoped, tag = 'scoped memory for tile.13']
  %s0 = inlined_call_operand.vmem [shape: f32[4], index: 0, kind: input, shape index: {}]
  %s1 = inlined_call_operand.vmem [shape: f32[16,4], index: 1, kind: output, shape index: {}]
  // Predicated region
  $region2: #{tile.13} parent=0 // pred_check
    _
  $region3: #{tile.13} parent=0 // pred_check_branch
    %3 = sbr.rel (0) target = $region5
  $region4: #{tile.13} parent=0 // pred_region
    _
  $region5: #{tile.13} parent=0 // pred_fallthru
    _
  %v4 = vld [vmem:[%s0] ss:$0 sm:$0xff]
  %5 = vst [vmem:[%s1] sm:$0xff] %v4
  %s6 = scalar_lea.vmem %s1, 8
  %7 = vst [vmem:[%s6] sm:$0xff] %v4

// kernel: tile.18
$region0: #{tile.18}
  %s0 = inlined_call_operand.vmem [shape: f32[16,4], index: 0, kind: input, shape index: {}]
  %s1 = inlined_call_operand.vmem [shape: f32[1,64], index: 1, kind: output, shape index: {}]
  $region1: #{tile.18} parent=0
    #allocation0 [shape = 'u8[4096]{0}', space=vmem, size = 0x1000, scoped, tag = 'scoped mem for output reshape']
    %v2 = vld [vmem:[%s0] sm:$0x1]
    %vm3 = vcmask 31744
    %4 = vst.msk [vmem:[#allocation0] sm:$0x1] %vm3, %v2
    %s5 = scalar_lea.vmem %s0, 15
    %v6 = vld [vmem:[%s5] sm:$0x1]
    %7 = vrot.lane.b32.xlu0 %v6, 60
    %v8 = vpop.permute.xlu0 %7
    %vm9 = vcmask 523744
    %10 = vst.msk [vmem:[#allocation0] sm:$0x1] %vm9, %v8
    %s11 = scalar_lea.vmem %s0, 14
    %v12 = vld [vmem:[%s11] sm:$0x1]
    %13 = vrot.lane.b32.xlu0 %v12, 56
    %v14 = vpop.permute.xlu0 %13
    %vm15 = vcmask 490944
    %16 = vst.msk [vmem:[#allocation0] sm:$0x1] %vm15, %v14
    %s17 = scalar_lea.vmem %s0, 13
    %v18 = vld [vmem:[%s17] sm:$0x1]
    %19 = vrot.lane.b32.xlu0 %v18, 52
    %v20 = vpop.permute.xlu0 %19
    %vm21 = vcmask 458144
    %22 = vst.msk [vmem:[#allocation0] sm:$0x1] %vm21, %v20
    %s23 = scalar_lea.vmem %s0, 12
    %v24 = vld [vmem:[%s23] sm:$0x1]
    %25 = vrot.lane.b32.xlu0 %v24, 48
    %v26 = vpop.permute.xlu0 %25
    %vm27 = vcmask 425344
    %28 = vst.msk [vmem:[#allocation0] sm:$0x1] %vm27, %v26
    %s29 = scalar_lea.vmem %s0, 11
    %v30 = vld [vmem:[%s29] sm:$0x1]
    %31 = vrot.lane.b32.xlu0 %v30, 44
    %v32 = vpop.permute.xlu0 %31
    %vm33 = vcmask 392544
    %34 = vst.msk [vmem:[#allocation0] sm:$0x1] %vm33, %v32
    %s35 = scalar_lea.vmem %s0, 10
    %v36 = vld [vmem:[%s35] sm:$0x1]
    %37 = vrot.lane.b32.xlu0 %v36, 40
    %v38 = vpop.permute.xlu0 %37
    %vm39 = vcmask 359744
    %40 = vst.msk [vmem:[#allocation0] sm:$0x1] %vm39, %v38
    %s41 = scalar_lea.vmem %s0, 9
    %v42 = vld [vmem:[%s41] sm:$0x1]
    %43 = vrot.lane.b32.xlu0 %v42, 36
    %v44 = vpop.permute.xlu0 %43
    %vm45 = vcmask 326944
    %46 = vst.msk [vmem:[#allocation0] sm:$0x1] %vm45, %v44
    %s47 = scalar_lea.vmem %s0, 8
    %v48 = vld [vmem:[%s47] sm:$0x1]
    %49 = vrot.lane.b32.xlu0 %v48, 32
    %v50 = vpop.permute.xlu0 %49
    %vm51 = vcmask 294144
    %52 = vst.msk [vmem:[#allocation0] sm:$0x1] %vm51, %v50
    %s53 = scalar_lea.vmem %s0, 7
    %v54 = vld [vmem:[%s53] sm:$0x1]
    %55 = vrot.lane.b32.xlu0 %v54, 28
    %v56 = vpop.permute.xlu0 %55
    %vm57 = vcmask 261344
    %58 = vst.msk [vmem:[#allocation0] sm:$0x1] %vm57, %v56
    %s59 = scalar_lea.vmem %s0, 6
    %v60 = vld [vmem:[%s59] sm:$0x1]
    %61 = vrot.lane.b32.xlu0 %v60, 24
    %v62 = vpop.permute.xlu0 %61
    %vm63 = vcmask 228544
    %64 = vst.msk [vmem:[#allocation0] sm:$0x1] %vm63, %v62
    %s65 = scalar_lea.vmem %s0, 5
    %v66 = vld [vmem:[%s65] sm:$0x1]
    %67 = vrot.lane.b32.xlu0 %v66, 20
    %v68 = vpop.permute.xlu0 %67
    %vm69 = vcmask 195744
    %70 = vst.msk [vmem:[#allocation0] sm:$0x1] %vm69, %v68
    %s71 = scalar_lea.vmem %s0, 4
    %v72 = vld [vmem:[%s71] sm:$0x1]
    %73 = vrot.lane.b32.xlu0 %v72, 16
    %v74 = vpop.permute.xlu0 %73
    %vm75 = vcmask 162944
    %76 = vst.msk [vmem:[#allocation0] sm:$0x1] %vm75, %v74
    %s77 = scalar_lea.vmem %s0, 3
    %v78 = vld [vmem:[%s77] sm:$0x1]
    %79 = vrot.lane.b32.xlu0 %v78, 12
    %v80 = vpop.permute.xlu0 %79
    %vm81 = vcmask 130144
    %82 = vst.msk [vmem:[#allocation0] sm:$0x1] %vm81, %v80
    %s83 = scalar_lea.vmem %s0, 2
    %v84 = vld [vmem:[%s83] sm:$0x1]
    %85 = vrot.lane.b32.xlu0 %v84, 8
    %v86 = vpop.permute.xlu0 %85
    %vm87 = vcmask 97344
    %88 = vst.msk [vmem:[#allocation0] sm:$0x1] %vm87, %v86
    %s89 = scalar_lea.vmem %s0, 1
    %v90 = vld [vmem:[%s89] sm:$0x1]
    %91 = vrot.lane.b32.xlu0 %v90, 4
    %v92 = vpop.permute.xlu0 %91
    %vm93 = vcmask 64544
    %94 = vst.msk [vmem:[#allocation0] sm:$0x1] %vm93, %v92
    %s96 = ssub.s32 2, 1
    %v97 = vld [vmem:[#allocation0] sm:%s96]
    %s99 = ssub.s32 2, 1
    %100 = vst [vmem:[%s1] sm:%s99] %v97

// kernel: wideresnet_block_forward.4
$region0: #{wideresnet_block_forward.4}
  #allocation0 [shape = 'u32[]', space=smem, size = 0x4, offset = 0x4, fixed_abs, tag = 'smem constant byte address 0x4 - core index']
  #allocation1 [shape = 'u32[72,128]{1,0:T(1,128)}', space=vmem, size = 0x9000, scoped, tag = 'internal scratch']
  %s0 = inlined_call_operand.vmem [shape: f32[32,64], index: 0, kind: input, shape index: {}]
  %s1 = inlined_call_operand.vmem [shape: f32[1,64], index: 1, kind: input, shape index: {}]
  %s2 = inlined_call_operand.vmem [shape: f32[1,64], index: 2, kind: input, shape index: {}]
  %s3 = inlined_call_operand.vmem [shape: bf16[32,64], index: 3, kind: output, shape index: {}]
  %s4 = sld [smem:[#allocation0]]
  $region22: #{wideresnet_block_forward.4} parent=0
    _
  %s6 = ssub.s32 1, %s4
  %s7 = scalar_select 0, %s6, %s4
  // Predicated region
  $region2: #{wideresnet_block_forward.4} parent=0 // pred_check
    _
  $region3: #{wideresnet_block_forward.4} parent=0 // pred_check_branch
    %9 = sbr.rel (0) target = $region5
  $region4: #{wideresnet_block_forward.4} parent=0 // pred_region
    _
  $region5: #{wideresnet_block_forward.4} parent=0 // pred_fallthru
    _
  // Predicated region
  $region6: #{wideresnet_block_forward.4} parent=0 // pred_check
    _
  $region7: #{wideresnet_block_forward.4} parent=0 // pred_check_branch
    %11 = sbr.rel (0) target = $region9
  $region8: #{wideresnet_block_forward.4} parent=0 // pred_region
    _
  $region9: #{wideresnet_block_forward.4} parent=0 // pred_fallthru
    _
  // Predicated region
  $region10: #{wideresnet_block_forward.4} parent=0 // pred_check
    _
  $region11: #{wideresnet_block_forward.4} parent=0 // pred_check_branch
    %13 = sbr.rel (0) target = $region13
  $region12: #{wideresnet_block_forward.4} parent=0 // pred_region
    _
  $region13: #{wideresnet_block_forward.4} parent=0 // pred_fallthru
    _
  %v14 = vld [vmem:[%s0] sm:$0xff]
  %v15 = vld [vmem:[%s0 + $0x8] sm:$0xff]
  %v16 = vld [vmem:[%s0 + $0x10] sm:$0xff]
  %v17 = vld [vmem:[%s0 + $0x18] sm:$0xff]
  %v18 = vld [vmem:[%s1] sm:$0x1]
  %v20 = vperm.slane %v18, 0
  %v22 = vmul.f32 %v14, %v20
  %v23 = vmul.f32 %v15, %v20
  %v24 = vmul.f32 %v16, %v20
  %v25 = vmul.f32 %v17, %v20
  %v26 = vld [vmem:[%s2] sm:$0x1]
  %v28 = vperm.slane %v26, 0
  %v30 = vadd.f32 %v22, %v28
  %v31 = vadd.f32 %v23, %v28
  %v32 = vadd.f32 %v24, %v28
  %v33 = vadd.f32 %v25, %v28
  %v34 = vmax.f32 %v30, 0.0
  %v35 = vmax.f32 %v31, 0.0
  %v36 = vmax.f32 %v32, 0.0
  %v37 = vmax.f32 %v33, 0.0
  %v38 = vpack.c.bf16 %v34, %v34
  %v39 = vpack.c.bf16 %v35, %v35
  %v40 = vpack.c.bf16 %v36, %v36
  %v41 = vpack.c.bf16 %v37, %v37
  %vm42 = vcmask 519168
  %43 = vst.msk [vmem:[%s3] sm:$0xf] %vm42, %v38
  %44 = vst.msk [vmem:[%s3 + $0x4] sm:$0xf] %vm42, %v39
  %45 = vst.msk [vmem:[%s3 + $0x8] sm:$0xf] %vm42, %v40
  %46 = vst.msk [vmem:[%s3 + $0xc] sm:$0xf] %vm42, %v41
  // Predicated region
  $region14: #{wideresnet_block_forward.4} parent=0 // pred_check
    _
  $region15: #{wideresnet_block_forward.4} parent=0 // pred_check_branch
    %48 = sbr.rel (0) target = $region17
  $region16: #{wideresnet_block_forward.4} parent=0 // pred_region
    _
  $region17: #{wideresnet_block_forward.4} parent=0 // pred_fallthru
    _
  // Predicated region
  $region18: #{wideresnet_block_forward.4} parent=0 // pred_check
    _
  $region19: #{wideresnet_block_forward.4} parent=0 // pred_check_branch
    %50 = sbr.rel (0) target = $region21
  $region20: #{wideresnet_block_forward.4} parent=0 // pred_region
    _
  $region21: #{wideresnet_block_forward.4} parent=0 // pred_fallthru
    _

// kernel: wideresnet_block_forward.5
$region0: #{wideresnet_block_forward.5}
  #allocation0 [shape = 'u32[]', space=smem, size = 0x4, offset = 0x4, fixed_abs, tag = 'smem constant byte address 0x4 - core index']
  #allocation1 [shape = 'u32[72,128]{1,0:T(1,128)}', space=vmem, size = 0x9000, scoped, tag = 'internal scratch']
  #allocation2 [shape = 'f32[128,128]{1,0:T(8,128)}', space=vmem, size = 0x10000, scoped, tag = 'scratch operand']
  %s0 = inlined_call_operand.vmem [shape: bf16[128,128], index: 0, kind: input, shape index: {}]
  %s1 = inlined_call_operand.vmem [shape: bf16[128,128], index: 1, kind: input, shape index: {}]
  %s2 = inlined_call_operand.vmem [shape: f32[1,128], index: 2, kind: input, shape index: {}]
  %s3 = inlined_call_operand.vmem [shape: bf16[128,128], index: 3, kind: output, shape index: {}]
  %s4 = sld [smem:[#allocation0]]
  $region30: #{wideresnet_block_forward.5} parent=0
    _
  %s6 = ssub.s32 1, %s4
  %s7 = scalar_select 0, %s6, %s4
  // Predicated region
  $region2: #{wideresnet_block_forward.5} parent=0 // pred_check
    _
  $region3: #{wideresnet_block_forward.5} parent=0 // pred_check_branch
    %9 = sbr.rel (0) target = $region5
  $region4: #{wideresnet_block_forward.5} parent=0 // pred_region
    _
  $region5: #{wideresnet_block_forward.5} parent=0 // pred_fallthru
    _
  // Predicated region
  $region6: #{wideresnet_block_forward.5} parent=0 // pred_check
    _
  $region7: #{wideresnet_block_forward.5} parent=0 // pred_check_branch
    %11 = sbr.rel (0) target = $region9
  $region8: #{wideresnet_block_forward.5} parent=0 // pred_region
    _
  $region9: #{wideresnet_block_forward.5} parent=0 // pred_fallthru
    _
  // Predicated region
  $region10: #{wideresnet_block_forward.5} parent=0 // pred_check
    _
  $region11: #{wideresnet_block_forward.5} parent=0 // pred_check_branch
    %13 = sbr.rel (0) target = $region13
  $region12: #{wideresnet_block_forward.5} parent=0 // pred_region
    _
  $region13: #{wideresnet_block_forward.5} parent=0 // pred_fallthru
    _
  %p14 = scmp.eq.s32.totalorder 0, 0
  // Predicated region
  $region14: #{wideresnet_block_forward.5} parent=0 // pred_check
    %p15 = pneg %p14
  $region15: #{wideresnet_block_forward.5} parent=0 // pred_check_branch
    %17 = sbr.rel (%p15) target = $region17
  $region16: #{wideresnet_block_forward.5} parent=0 // pred_region
    %18 = vst [vmem:[#allocation2] sm:$0xff] 0.0
    %19 = vst [vmem:[#allocation2 + $0x8] sm:$0xff] 0.0
    %20 = vst [vmem:[#allocation2 + $0x10] sm:$0xff] 0.0
    %21 = vst [vmem:[#allocation2 + $0x18] sm:$0xff] 0.0
    %22 = vst [vmem:[#allocation2 + $0x20] sm:$0xff] 0.0
    %23 = vst [vmem:[#allocation2 + $0x28] sm:$0xff] 0.0
    %24 = vst [vmem:[#allocation2 + $0x30] sm:$0xff] 0.0
    %25 = vst [vmem:[#allocation2 + $0x38] sm:$0xff] 0.0
    %26 = vst [vmem:[#allocation2 + $0x40] sm:$0xff] 0.0
    %27 = vst [vmem:[#allocation2 + $0x48] sm:$0xff] 0.0
    %28 = vst [vmem:[#allocation2 + $0x50] sm:$0xff] 0.0
    %29 = vst [vmem:[#allocation2 + $0x58] sm:$0xff] 0.0
    %30 = vst [vmem:[#allocation2 + $0x60] sm:$0xff] 0.0
    %31 = vst [vmem:[#allocation2 + $0x68] sm:$0xff] 0.0
    %32 = vst [vmem:[#allocation2 + $0x70] sm:$0xff] 0.0
    %33 = vst [vmem:[#allocation2 + $0x78] sm:$0xff] 0.0
  $region17: #{wideresnet_block_forward.5} parent=0 // pred_fallthru
    _
  %v34 = vld [vmem:[#allocation2] sm:$0xff]
  %v35 = vld [vmem:[#allocation2 + $0x8] sm:$0xff]
  %v36 = vld [vmem:[#allocation2 + $0x10] sm:$0xff]
  %v37 = vld [vmem:[#allocation2 + $0x18] sm:$0xff]
  %v38 = vld [vmem:[#allocation2 + $0x20] sm:$0xff]
  %v39 = vld [vmem:[#allocation2 + $0x28] sm:$0xff]
  %v40 = vld [vmem:[#allocation2 + $0x30] sm:$0xff]
  %v41 = vld [vmem:[#allocation2 + $0x38] sm:$0xff]
  %v42 = vld [vmem:[#allocation2 + $0x40] sm:$0xff]
  %v43 = vld [vmem:[#allocation2 + $0x48] sm:$0xff]
  %v44 = vld [vmem:[#allocation2 + $0x50] sm:$0xff]
  %v45 = vld [vmem:[#allocation2 + $0x58] sm:$0xff]
  %v46 = vld [vmem:[#allocation2 + $0x60] sm:$0xff]
  %v47 = vld [vmem:[#allocation2 + $0x68] sm:$0xff]
  %v48 = vld [vmem:[#allocation2 + $0x70] sm:$0xff]
  %v49 = vld [vmem:[#allocation2 + $0x78] sm:$0xff]
  %v50 = vld [vmem:[%s0] sm:$0xf]
  %v51 = vld [vmem:[%s0 + $0x4] sm:$0xf]
  %v52 = vld [vmem:[%s0 + $0x8] sm:$0xf]
  %v53 = vld [vmem:[%s0 + $0xc] sm:$0xf]
  %v54 = vld [vmem:[%s0 + $0x10] sm:$0xf]
  %v55 = vld [vmem:[%s0 + $0x14] sm:$0xf]
  %v56 = vld [vmem:[%s0 + $0x18] sm:$0xf]
  %v57 = vld [vmem:[%s0 + $0x1c] sm:$0xf]
  %v58 = vld [vmem:[%s0 + $0x20] sm:$0xf]
  %v59 = vld [vmem:[%s0 + $0x24] sm:$0xf]
  %v60 = vld [vmem:[%s0 + $0x28] sm:$0xf]
  %v61 = vld [vmem:[%s0 + $0x2c] sm:$0xf]
  %v62 = vld [vmem:[%s0 + $0x30] sm:$0xf]
  %v63 = vld [vmem:[%s0 + $0x34] sm:$0xf]
  %v64 = vld [vmem:[%s0 + $0x38] sm:$0xf]
  %v65 = vld [vmem:[%s0 + $0x3c] sm:$0xf]
  %v66 = vld [vmem:[%s1] sm:$0xf]
  %v67 = vld [vmem:[%s1 + $0x4] sm:$0xf]
  %v68 = vld [vmem:[%s1 + $0x8] sm:$0xf]
  %v69 = vld [vmem:[%s1 + $0xc] sm:$0xf]
  %v70 = vld [vmem:[%s1 + $0x10] sm:$0xf]
  %v71 = vld [vmem:[%s1 + $0x14] sm:$0xf]
  %v72 = vld [vmem:[%s1 + $0x18] sm:$0xf]
  %v73 = vld [vmem:[%s1 + $0x1c] sm:$0xf]
  %v74 = vld [vmem:[%s1 + $0x20] sm:$0xf]
  %v75 = vld [vmem:[%s1 + $0x24] sm:$0xf]
  %v76 = vld [vmem:[%s1 + $0x28] sm:$0xf]
  %v77 = vld [vmem:[%s1 + $0x2c] sm:$0xf]
  %v78 = vld [vmem:[%s1 + $0x30] sm:$0xf]
  %v79 = vld [vmem:[%s1 + $0x34] sm:$0xf]
  %v80 = vld [vmem:[%s1 + $0x38] sm:$0xf]
  %v81 = vld [vmem:[%s1 + $0x3c] sm:$0xf]
  %v98 = vunpack.c.l.b16 %v50
  %v99 = vunpack.c.l.b16 %v51
  %v100 = vunpack.c.l.b16 %v52
  %v101 = vunpack.c.l.b16 %v53
  %v102 = vunpack.c.l.b16 %v54
  %v103 = vunpack.c.l.b16 %v55
  %v104 = vunpack.c.l.b16 %v56
  %v105 = vunpack.c.l.b16 %v57
  %v106 = vunpack.c.l.b16 %v58
  %v107 = vunpack.c.l.b16 %v59
  %v108 = vunpack.c.l.b16 %v60
  %v109 = vunpack.c.l.b16 %v61
  %v110 = vunpack.c.l.b16 %v62
  %v111 = vunpack.c.l.b16 %v63
  %v112 = vunpack.c.l.b16 %v64
  %v113 = vunpack.c.l.b16 %v65
  %v114 = vpack.c.b16 %v99, %v98
  %v115 = vpack.c.b16 %v101, %v100
  %v116 = vpack.c.b16 %v103, %v102
  %v117 = vpack.c.b16 %v105, %v104
  %v118 = vpack.c.b16 %v107, %v106
  %v119 = vpack.c.b16 %v109, %v108
  %v120 = vpack.c.b16 %v111, %v110
  %v121 = vpack.c.b16 %v113, %v112
  %v146 = vunpack.c.l.b16 %v66
  %v147 = vunpack.c.l.b16 %v67
  %v148 = vunpack.c.l.b16 %v68
  %v149 = vunpack.c.l.b16 %v69
  %v150 = vunpack.c.l.b16 %v70
  %v151 = vunpack.c.l.b16 %v71
  %v152 = vunpack.c.l.b16 %v72
  %v153 = vunpack.c.l.b16 %v73
  %v154 = vunpack.c.l.b16 %v74
  %v155 = vunpack.c.l.b16 %v75
  %v156 = vunpack.c.l.b16 %v76
  %v157 = vunpack.c.l.b16 %v77
  %v158 = vunpack.c.l.b16 %v78
  %v159 = vunpack.c.l.b16 %v79
  %v160 = vunpack.c.l.b16 %v80
  %v161 = vunpack.c.l.b16 %v81
  %v162 = vpack.c.b16 %v147, %v146
  %v163 = vpack.c.b16 %v149, %v148
  %v164 = vpack.c.b16 %v151, %v150
  %v165 = vpack.c.b16 %v153, %v152
  %v166 = vpack.c.b16 %v155, %v154
  %v167 = vpack.c.b16 %v157, %v156
  %v168 = vpack.c.b16 %v159, %v158
  %v169 = vpack.c.b16 %v161, %v160
  %178 = vmatpush.bf16.msra.mxu0 %v169
  %179 = vmatpush.bf16.msra.mxu0 %v168
  %180 = vmatpush.bf16.msra.mxu0 %v167
  %181 = vmatpush.bf16.msra.mxu0 %v166
  %182 = vmatpush.bf16.msra.mxu0 %v165
  %183 = vmatpush.bf16.msra.mxu0 %v164
  %184 = vmatpush.bf16.msra.mxu0 %v163
  %185 = vmatpush.bf16.msra.mxu0 %v162
  %186 = vmatmul.bf16.gmra.mxu0 %v114
  %v187 = vpop.f32.mrf.mxu0
  %v188 = vadd.f32 0.0, %v187
  %v189 = vpop.f32.mrf.mxu0
  %v190 = vadd.f32 0.0, %v189
  %191 = vmatmul.bf16.gmra.mxu0 %v115
  %v192 = vpop.f32.mrf.mxu0
  %v193 = vadd.f32 0.0, %v192
  %v194 = vpop.f32.mrf.mxu0
  %v195 = vadd.f32 0.0, %v194
  %196 = vmatmul.bf16.gmra.mxu0 %v116
  %v197 = vpop.f32.mrf.mxu0
  %v198 = vadd.f32 0.0, %v197
  %v199 = vpop.f32.mrf.mxu0
  %v200 = vadd.f32 0.0, %v199
  %201 = vmatmul.bf16.gmra.mxu0 %v117
  %v202 = vpop.f32.mrf.mxu0
  %v203 = vadd.f32 0.0, %v202
  %v204 = vpop.f32.mrf.mxu0
  %v205 = vadd.f32 0.0, %v204
  %206 = vmatmul.bf16.gmra.mxu0 %v118
  %v207 = vpop.f32.mrf.mxu0
  %v208 = vadd.f32 0.0, %v207
  %v209 = vpop.f32.mrf.mxu0
  %v210 = vadd.f32 0.0, %v209
  %211 = vmatmul.bf16.gmra.mxu0 %v119
  %v212 = vpop.f32.mrf.mxu0
  %v213 = vadd.f32 0.0, %v212
  %v214 = vpop.f32.mrf.mxu0
  %v215 = vadd.f32 0.0, %v214
  %216 = vmatmul.bf16.gmra.mxu0 %v120
  %v217 = vpop.f32.mrf.mxu0
  %v218 = vadd.f32 0.0, %v217
  %v219 = vpop.f32.mrf.mxu0
  %v220 = vadd.f32 0.0, %v219
  %221 = vmatmul.bf16.gmra.mxu0 %v121
  %v222 = vpop.f32.mrf.mxu0
  %v223 = vadd.f32 0.0, %v222
  %v224 = vpop.f32.mrf.mxu0
  %v225 = vadd.f32 0.0, %v224
  %226 = vdwg.mxu0
  %v227 = vadd.f32 %v34, %v188
  %v228 = vadd.f32 %v35, %v190
  %v229 = vadd.f32 %v36, %v193
  %v230 = vadd.f32 %v37, %v195
  %v231 = vadd.f32 %v38, %v198
  %v232 = vadd.f32 %v39, %v200
  %v233 = vadd.f32 %v40, %v203
  %v234 = vadd.f32 %v41, %v205
  %v235 = vadd.f32 %v42, %v208
  %v236 = vadd.f32 %v43, %v210
  %v237 = vadd.f32 %v44, %v213
  %v238 = vadd.f32 %v45, %v215
  %v239 = vadd.f32 %v46, %v218
  %v240 = vadd.f32 %v47, %v220
  %v241 = vadd.f32 %v48, %v223
  %v242 = vadd.f32 %v49, %v225
  %243 = vst [vmem:[#allocation2] sm:$0xff] %v227
  %244 = vst [vmem:[#allocation2 + $0x8] sm:$0xff] %v228
  %245 = vst [vmem:[#allocation2 + $0x10] sm:$0xff] %v229
  %246 = vst [vmem:[#allocation2 + $0x18] sm:$0xff] %v230
  %247 = vst [vmem:[#allocation2 + $0x20] sm:$0xff] %v231
  %248 = vst [vmem:[#allocation2 + $0x28] sm:$0xff] %v232
  %249 = vst [vmem:[#allocation2 + $0x30] sm:$0xff] %v233
  %250 = vst [vmem:[#allocation2 + $0x38] sm:$0xff] %v234
  %251 = vst [vmem:[#allocation2 + $0x40] sm:$0xff] %v235
  %252 = vst [vmem:[#allocation2 + $0x48] sm:$0xff] %v236
  %253 = vst [vmem:[#allocation2 + $0x50] sm:$0xff] %v237
  %254 = vst [vmem:[#allocation2 + $0x58] sm:$0xff] %v238
  %255 = vst [vmem:[#allocation2 + $0x60] sm:$0xff] %v239
  %256 = vst [vmem:[#allocation2 + $0x68] sm:$0xff] %v240
  %257 = vst [vmem:[#allocation2 + $0x70] sm:$0xff] %v241
  %258 = vst [vmem:[#allocation2 + $0x78] sm:$0xff] %v242
  // Predicated region
  $region18: #{wideresnet_block_forward.5} parent=0 // pred_check
    %p259 = pneg %p14
  $region19: #{wideresnet_block_forward.5} parent=0 // pred_check_branch
    %261 = sbr.rel (%p259) target = $region21
  $region20: #{wideresnet_block_forward.5} parent=0 // pred_region
    %v262 = vld [vmem:[#allocation2] sm:$0xff]
    %v263 = vld [vmem:[#allocation2 + $0x8] sm:$0xff]
    %v264 = vld [vmem:[#allocation2 + $0x10] sm:$0xff]
    %v265 = vld [vmem:[#allocation2 + $0x18] sm:$0xff]
    %v266 = vld [vmem:[#allocation2 + $0x20] sm:$0xff]
    %v267 = vld [vmem:[#allocation2 + $0x28] sm:$0xff]
    %v268 = vld [vmem:[#allocation2 + $0x30] sm:$0xff]
    %v269 = vld [vmem:[#allocation2 + $0x38] sm:$0xff]
    %v270 = vld [vmem:[#allocation2 + $0x40] sm:$0xff]
    %v271 = vld [vmem:[#allocation2 + $0x48] sm:$0xff]
    %v272 = vld [vmem:[#allocation2 + $0x50] sm:$0xff]
    %v273 = vld [vmem:[#allocation2 + $0x58] sm:$0xff]
    %v274 = vld [vmem:[#allocation2 + $0x60] sm:$0xff]
    %v275 = vld [vmem:[#allocation2 + $0x68] sm:$0xff]
    %v276 = vld [vmem:[#allocation2 + $0x70] sm:$0xff]
    %v277 = vld [vmem:[#allocation2 + $0x78] sm:$0xff]
    %v278 = vld [vmem:[%s2] sm:$0x1]
    %v280 = vperm.slane %v278, 0
    %v282 = vadd.f32 %v262, %v280
    %v283 = vadd.f32 %v263, %v280
    %v284 = vadd.f32 %v264, %v280
    %v285 = vadd.f32 %v265, %v280
    %v286 = vadd.f32 %v266, %v280
    %v287 = vadd.f32 %v267, %v280
    %v288 = vadd.f32 %v268, %v280
    %v289 = vadd.f32 %v269, %v280
    %v290 = vadd.f32 %v270, %v280
    %v291 = vadd.f32 %v271, %v280
    %v292 = vadd.f32 %v272, %v280
    %v293 = vadd.f32 %v273, %v280
    %v294 = vadd.f32 %v274, %v280
    %v295 = vadd.f32 %v275, %v280
    %v296 = vadd.f32 %v276, %v280
    %v297 = vadd.f32 %v277, %v280
    %v298 = vmax.f32 %v282, 0.0
    %v299 = vmax.f32 %v283, 0.0
    %v300 = vmax.f32 %v284, 0.0
    %v301 = vmax.f32 %v285, 0.0
    %v302 = vmax.f32 %v286, 0.0
    %v303 = vmax.f32 %v287, 0.0
    %v304 = vmax.f32 %v288, 0.0
    %v305 = vmax.f32 %v289, 0.0
    %v306 = vmax.f32 %v290, 0.0
    %v307 = vmax.f32 %v291, 0.0
    %v308 = vmax.f32 %v292, 0.0
    %v309 = vmax.f32 %v293, 0.0
    %v310 = vmax.f32 %v294, 0.0
    %v311 = vmax.f32 %v295, 0.0
    %v312 = vmax.f32 %v296, 0.0
    %v313 = vmax.f32 %v297, 0.0
    %v314 = vpack.c.bf16 %v298, %v298
    %v315 = vpack.c.bf16 %v299, %v299
    %v316 = vpack.c.bf16 %v300, %v300
    %v317 = vpack.c.bf16 %v301, %v301
    %v318 = vpack.c.bf16 %v302, %v302
    %v319 = vpack.c.bf16 %v303, %v303
    %v320 = vpack.c.bf16 %v304, %v304
    %v321 = vpack.c.bf16 %v305, %v305
    %v322 = vpack.c.bf16 %v306, %v306
    %v323 = vpack.c.bf16 %v307, %v307
    %v324 = vpack.c.bf16 %v308, %v308
    %v325 = vpack.c.bf16 %v309, %v309
    %v326 = vpack.c.bf16 %v310, %v310
    %v327 = vpack.c.bf16 %v311, %v311
    %v328 = vpack.c.bf16 %v312, %v312
    %v329 = vpack.c.bf16 %v313, %v313
    %330 = vst [vmem:[%s3] sm:$0xf] %v314
    %331 = vst [vmem:[%s3 + $0x4] sm:$0xf] %v315
    %332 = vst [vmem:[%s3 + $0x8] sm:$0xf] %v316
    %333 = vst [vmem:[%s3 + $0xc] sm:$0xf] %v317
    %334 = vst [vmem:[%s3 + $0x10] sm:$0xf] %v318
    %335 = vst [vmem:[%s3 + $0x14] sm:$0xf] %v319
    %336 = vst [vmem:[%s3 + $0x18] sm:$0xf] %v320
    %337 = vst [vmem:[%s3 + $0x1c] sm:$0xf] %v321
    %338 = vst [vmem:[%s3 + $0x20] sm:$0xf] %v322
    %339 = vst [vmem:[%s3 + $0x24] sm:$0xf] %v323
    %340 = vst [vmem:[%s3 + $0x28] sm:$0xf] %v324
    %341 = vst [vmem:[%s3 + $0x2c] sm:$0xf] %v325
    %342 = vst [vmem:[%s3 + $0x30] sm:$0xf] %v326
    %343 = vst [vmem:[%s3 + $0x34] sm:$0xf] %v327
    %344 = vst [vmem:[%s3 + $0x38] sm:$0xf] %v328
    %345 = vst [vmem:[%s3 + $0x3c] sm:$0xf] %v329
  $region21: #{wideresnet_block_forward.5} parent=0 // pred_fallthru
    _
  // Predicated region
  $region22: #{wideresnet_block_forward.5} parent=0 // pred_check
    _
  $region23: #{wideresnet_block_forward.5} parent=0 // pred_check_branch
    %347 = sbr.rel (0) target = $region25
  $region24: #{wideresnet_block_forward.5} parent=0 // pred_region
    _
  $region25: #{wideresnet_block_forward.5} parent=0 // pred_fallthru
    _
  // Predicated region
  $region26: #{wideresnet_block_forward.5} parent=0 // pred_check
    _
  $region27: #{wideresnet_block_forward.5} parent=0 // pred_check_branch
    %349 = sbr.rel (0) target = $region29
  $region28: #{wideresnet_block_forward.5} parent=0 // pred_region
    _
  $region29: #{wideresnet_block_forward.5} parent=0 // pred_fallthru
    _

// kernel: wideresnet_block_forward.6
$region0: #{wideresnet_block_forward.6}
  #allocation0 [shape = 'u32[]', space=smem, size = 0x4, offset = 0x4, fixed_abs, tag = 'smem constant byte address 0x4 - core index']
  #allocation1 [shape = 'u32[72,128]{1,0:T(1,128)}', space=vmem, size = 0x9000, scoped, tag = 'internal scratch']
  #allocation2 [shape = 'f32[128,128]{1,0:T(8,128)}', space=vmem, size = 0x10000, scoped, tag = 'scratch operand']
  %s0 = inlined_call_operand.vmem [shape: bf16[128,128], index: 0, kind: input, shape index: {}]
  %s1 = inlined_call_operand.vmem [shape: bf16[128,128], index: 1, kind: input, shape index: {}]
  %s2 = inlined_call_operand.vmem [shape: f32[1,128], index: 2, kind: input, shape index: {}]
  %s3 = inlined_call_operand.vmem [shape: bf16[128,128], index: 3, kind: output, shape index: {}]
  %s4 = sld [smem:[#allocation0]]
  $region30: #{wideresnet_block_forward.6} parent=0
    _
  %s6 = ssub.s32 1, %s4
  %s7 = scalar_select 0, %s6, %s4
  // Predicated region
  $region2: #{wideresnet_block_forward.6} parent=0 // pred_check
    _
  $region3: #{wideresnet_block_forward.6} parent=0 // pred_check_branch
    %9 = sbr.rel (0) target = $region5
  $region4: #{wideresnet_block_forward.6} parent=0 // pred_region
    _
  $region5: #{wideresnet_block_forward.6} parent=0 // pred_fallthru
    _
  // Predicated region
  $region6: #{wideresnet_block_forward.6} parent=0 // pred_check
    _
  $region7: #{wideresnet_block_forward.6} parent=0 // pred_check_branch
    %11 = sbr.rel (0) target = $region9
  $region8: #{wideresnet_block_forward.6} parent=0 // pred_region
    _
  $region9: #{wideresnet_block_forward.6} parent=0 // pred_fallthru
    _
  // Predicated region
  $region10: #{wideresnet_block_forward.6} parent=0 // pred_check
    _
  $region11: #{wideresnet_block_forward.6} parent=0 // pred_check_branch
    %13 = sbr.rel (0) target = $region13
  $region12: #{wideresnet_block_forward.6} parent=0 // pred_region
    _
  $region13: #{wideresnet_block_forward.6} parent=0 // pred_fallthru
    _
  %p14 = scmp.eq.s32.totalorder 0, 0
  // Predicated region
  $region14: #{wideresnet_block_forward.6} parent=0 // pred_check
    %p15 = pneg %p14
  $region15: #{wideresnet_block_forward.6} parent=0 // pred_check_branch
    %17 = sbr.rel (%p15) target = $region17
  $region16: #{wideresnet_block_forward.6} parent=0 // pred_region
    %18 = vst [vmem:[#allocation2] sm:$0xff] 0.0
    %19 = vst [vmem:[#allocation2 + $0x8] sm:$0xff] 0.0
    %20 = vst [vmem:[#allocation2 + $0x10] sm:$0xff] 0.0
    %21 = vst [vmem:[#allocation2 + $0x18] sm:$0xff] 0.0
    %22 = vst [vmem:[#allocation2 + $0x20] sm:$0xff] 0.0
    %23 = vst [vmem:[#allocation2 + $0x28] sm:$0xff] 0.0
    %24 = vst [vmem:[#allocation2 + $0x30] sm:$0xff] 0.0
    %25 = vst [vmem:[#allocation2 + $0x38] sm:$0xff] 0.0
    %26 = vst [vmem:[#allocation2 + $0x40] sm:$0xff] 0.0
    %27 = vst [vmem:[#allocation2 + $0x48] sm:$0xff] 0.0
    %28 = vst [vmem:[#allocation2 + $0x50] sm:$0xff] 0.0
    %29 = vst [vmem:[#allocation2 + $0x58] sm:$0xff] 0.0
    %30 = vst [vmem:[#allocation2 + $0x60] sm:$0xff] 0.0
    %31 = vst [vmem:[#allocation2 + $0x68] sm:$0xff] 0.0
    %32 = vst [vmem:[#allocation2 + $0x70] sm:$0xff] 0.0
    %33 = vst [vmem:[#allocation2 + $0x78] sm:$0xff] 0.0
  $region17: #{wideresnet_block_forward.6} parent=0 // pred_fallthru
    _
  %v34 = vld [vmem:[#allocation2] sm:$0xff]
  %v35 = vld [vmem:[#allocation2 + $0x8] sm:$0xff]
  %v36 = vld [vmem:[#allocation2 + $0x10] sm:$0xff]
  %v37 = vld [vmem:[#allocation2 + $0x18] sm:$0xff]
  %v38 = vld [vmem:[#allocation2 + $0x20] sm:$0xff]
  %v39 = vld [vmem:[#allocation2 + $0x28] sm:$0xff]
  %v40 = vld [vmem:[#allocation2 + $0x30] sm:$0xff]
  %v41 = vld [vmem:[#allocation2 + $0x38] sm:$0xff]
  %v42 = vld [vmem:[#allocation2 + $0x40] sm:$0xff]
  %v43 = vld [vmem:[#allocation2 + $0x48] sm:$0xff]
  %v44 = vld [vmem:[#allocation2 + $0x50] sm:$0xff]
  %v45 = vld [vmem:[#allocation2 + $0x58] sm:$0xff]
  %v46 = vld [vmem:[#allocation2 + $0x60] sm:$0xff]
  %v47 = vld [vmem:[#allocation2 + $0x68] sm:$0xff]
  %v48 = vld [vmem:[#allocation2 + $0x70] sm:$0xff]
  %v49 = vld [vmem:[#allocation2 + $0x78] sm:$0xff]
  %v50 = vld [vmem:[%s0] sm:$0xf]
  %v51 = vld [vmem:[%s0 + $0x4] sm:$0xf]
  %v52 = vld [vmem:[%s0 + $0x8] sm:$0xf]
  %v53 = vld [vmem:[%s0 + $0xc] sm:$0xf]
  %v54 = vld [vmem:[%s0 + $0x10] sm:$0xf]
  %v55 = vld [vmem:[%s0 + $0x14] sm:$0xf]
  %v56 = vld [vmem:[%s0 + $0x18] sm:$0xf]
  %v57 = vld [vmem:[%s0 + $0x1c] sm:$0xf]
  %v58 = vld [vmem:[%s0 + $0x20] sm:$0xf]
  %v59 = vld [vmem:[%s0 + $0x24] sm:$0xf]
  %v60 = vld [vmem:[%s0 + $0x28] sm:$0xf]
  %v61 = vld [vmem:[%s0 + $0x2c] sm:$0xf]
  %v62 = vld [vmem:[%s0 + $0x30] sm:$0xf]
  %v63 = vld [vmem:[%s0 + $0x34] sm:$0xf]
  %v64 = vld [vmem:[%s0 + $0x38] sm:$0xf]
  %v65 = vld [vmem:[%s0 + $0x3c] sm:$0xf]
  %v66 = vld [vmem:[%s1] sm:$0xf]
  %v67 = vld [vmem:[%s1 + $0x4] sm:$0xf]
  %v68 = vld [vmem:[%s1 + $0x8] sm:$0xf]
  %v69 = vld [vmem:[%s1 + $0xc] sm:$0xf]
  %v70 = vld [vmem:[%s1 + $0x10] sm:$0xf]
  %v71 = vld [vmem:[%s1 + $0x14] sm:$0xf]
  %v72 = vld [vmem:[%s1 + $0x18] sm:$0xf]
  %v73 = vld [vmem:[%s1 + $0x1c] sm:$0xf]
  %v74 = vld [vmem:[%s1 + $0x20] sm:$0xf]
  %v75 = vld [vmem:[%s1 + $0x24] sm:$0xf]
  %v76 = vld [vmem:[%s1 + $0x28] sm:$0xf]
  %v77 = vld [vmem:[%s1 + $0x2c] sm:$0xf]
  %v78 = vld [vmem:[%s1 + $0x30] sm:$0xf]
  %v79 = vld [vmem:[%s1 + $0x34] sm:$0xf]
  %v80 = vld [vmem:[%s1 + $0x38] sm:$0xf]
  %v81 = vld [vmem:[%s1 + $0x3c] sm:$0xf]
  %v98 = vunpack.c.l.b16 %v50
  %v99 = vunpack.c.l.b16 %v51
  %v100 = vunpack.c.l.b16 %v52
  %v101 = vunpack.c.l.b16 %v53
  %v102 = vunpack.c.l.b16 %v54
  %v103 = vunpack.c.l.b16 %v55
  %v104 = vunpack.c.l.b16 %v56
  %v105 = vunpack.c.l.b16 %v57
  %v106 = vunpack.c.l.b16 %v58
  %v107 = vunpack.c.l.b16 %v59
  %v108 = vunpack.c.l.b16 %v60
  %v109 = vunpack.c.l.b16 %v61
  %v110 = vunpack.c.l.b16 %v62
  %v111 = vunpack.c.l.b16 %v63
  %v112 = vunpack.c.l.b16 %v64
  %v113 = vunpack.c.l.b16 %v65
  %v114 = vpack.c.b16 %v99, %v98
  %v115 = vpack.c.b16 %v101, %v100
  %v116 = vpack.c.b16 %v103, %v102
  %v117 = vpack.c.b16 %v105, %v104
  %v118 = vpack.c.b16 %v107, %v106
  %v119 = vpack.c.b16 %v109, %v108
  %v120 = vpack.c.b16 %v111, %v110
  %v121 = vpack.c.b16 %v113, %v112
  %v146 = vunpack.c.l.b16 %v66
  %v147 = vunpack.c.l.b16 %v67
  %v148 = vunpack.c.l.b16 %v68
  %v149 = vunpack.c.l.b16 %v69
  %v150 = vunpack.c.l.b16 %v70
  %v151 = vunpack.c.l.b16 %v71
  %v152 = vunpack.c.l.b16 %v72
  %v153 = vunpack.c.l.b16 %v73
  %v154 = vunpack.c.l.b16 %v74
  %v155 = vunpack.c.l.b16 %v75
  %v156 = vunpack.c.l.b16 %v76
  %v157 = vunpack.c.l.b16 %v77
  %v158 = vunpack.c.l.b16 %v78
  %v159 = vunpack.c.l.b16 %v79
  %v160 = vunpack.c.l.b16 %v80
  %v161 = vunpack.c.l.b16 %v81
  %v162 = vpack.c.b16 %v147, %v146
  %v163 = vpack.c.b16 %v149, %v148
  %v164 = vpack.c.b16 %v151, %v150
  %v165 = vpack.c.b16 %v153, %v152
  %v166 = vpack.c.b16 %v155, %v154
  %v167 = vpack.c.b16 %v157, %v156
  %v168 = vpack.c.b16 %v159, %v158
  %v169 = vpack.c.b16 %v161, %v160
  %178 = vmatpush.bf16.msra.mxu0 %v169
  %179 = vmatpush.bf16.msra.mxu0 %v168
  %180 = vmatpush.bf16.msra.mxu0 %v167
  %181 = vmatpush.bf16.msra.mxu0 %v166
  %182 = vmatpush.bf16.msra.mxu0 %v165
  %183 = vmatpush.bf16.msra.mxu0 %v164
  %184 = vmatpush.bf16.msra.mxu0 %v163
  %185 = vmatpush.bf16.msra.mxu0 %v162
  %186 = vmatmul.bf16.gmra.mxu0 %v114
  %v187 = vpop.f32.mrf.mxu0
  %v188 = vadd.f32 0.0, %v187
  %v189 = vpop.f32.mrf.mxu0
  %v190 = vadd.f32 0.0, %v189
  %191 = vmatmul.bf16.gmra.mxu0 %v115
  %v192 = vpop.f32.mrf.mxu0
  %v193 = vadd.f32 0.0, %v192
  %v194 = vpop.f32.mrf.mxu0
  %v195 = vadd.f32 0.0, %v194
  %196 = vmatmul.bf16.gmra.mxu0 %v116
  %v197 = vpop.f32.mrf.mxu0
  %v198 = vadd.f32 0.0, %v197
  %v199 = vpop.f32.mrf.mxu0
  %v200 = vadd.f32 0.0, %v199
  %201 = vmatmul.bf16.gmra.mxu0 %v117
  %v202 = vpop.f32.mrf.mxu0
  %v203 = vadd.f32 0.0, %v202
  %v204 = vpop.f32.mrf.mxu0
  %v205 = vadd.f32 0.0, %v204
  %206 = vmatmul.bf16.gmra.mxu0 %v118
  %v207 = vpop.f32.mrf.mxu0
  %v208 = vadd.f32 0.0, %v207
  %v209 = vpop.f32.mrf.mxu0
  %v210 = vadd.f32 0.0, %v209
  %211 = vmatmul.bf16.gmra.mxu0 %v119
  %v212 = vpop.f32.mrf.mxu0
  %v213 = vadd.f32 0.0, %v212
  %v214 = vpop.f32.mrf.mxu0
  %v215 = vadd.f32 0.0, %v214
  %216 = vmatmul.bf16.gmra.mxu0 %v120
  %v217 = vpop.f32.mrf.mxu0
  %v218 = vadd.f32 0.0, %v217
  %v219 = vpop.f32.mrf.mxu0
  %v220 = vadd.f32 0.0, %v219
  %221 = vmatmul.bf16.gmra.mxu0 %v121
  %v222 = vpop.f32.mrf.mxu0
  %v223 = vadd.f32 0.0, %v222
  %v224 = vpop.f32.mrf.mxu0
  %v225 = vadd.f32 0.0, %v224
  %226 = vdwg.mxu0
  %v227 = vadd.f32 %v34, %v188
  %v228 = vadd.f32 %v35, %v190
  %v229 = vadd.f32 %v36, %v193
  %v230 = vadd.f32 %v37, %v195
  %v231 = vadd.f32 %v38, %v198
  %v232 = vadd.f32 %v39, %v200
  %v233 = vadd.f32 %v40, %v203
  %v234 = vadd.f32 %v41, %v205
  %v235 = vadd.f32 %v42, %v208
  %v236 = vadd.f32 %v43, %v210
  %v237 = vadd.f32 %v44, %v213
  %v238 = vadd.f32 %v45, %v215
  %v239 = vadd.f32 %v46, %v218
  %v240 = vadd.f32 %v47, %v220
  %v241 = vadd.f32 %v48, %v223
  %v242 = vadd.f32 %v49, %v225
  %243 = vst [vmem:[#allocation2] sm:$0xff] %v227
  %244 = vst [vmem:[#allocation2 + $0x8] sm:$0xff] %v228
  %245 = vst [vmem:[#allocation2 + $0x10] sm:$0xff] %v229
  %246 = vst [vmem:[#allocation2 + $0x18] sm:$0xff] %v230
  %247 = vst [vmem:[#allocation2 + $0x20] sm:$0xff] %v231
  %248 = vst [vmem:[#allocation2 + $0x28] sm:$0xff] %v232
  %249 = vst [vmem:[#allocation2 + $0x30] sm:$0xff] %v233
  %250 = vst [vmem:[#allocation2 + $0x38] sm:$0xff] %v234
  %251 = vst [vmem:[#allocation2 + $0x40] sm:$0xff] %v235
  %252 = vst [vmem:[#allocation2 + $0x48] sm:$0xff] %v236
  %253 = vst [vmem:[#allocation2 + $0x50] sm:$0xff] %v237
  %254 = vst [vmem:[#allocation2 + $0x58] sm:$0xff] %v238
  %255 = vst [vmem:[#allocation2 + $0x60] sm:$0xff] %v239
  %256 = vst [vmem:[#allocation2 + $0x68] sm:$0xff] %v240
  %257 = vst [vmem:[#allocation2 + $0x70] sm:$0xff] %v241
  %258 = vst [vmem:[#allocation2 + $0x78] sm:$0xff] %v242
  // Predicated region
  $region18: #{wideresnet_block_forward.6} parent=0 // pred_check
    %p259 = pneg %p14
  $region19: #{wideresnet_block_forward.6} parent=0 // pred_check_branch
    %261 = sbr.rel (%p259) target = $region21
  $region20: #{wideresnet_block_forward.6} parent=0 // pred_region
    %v262 = vld [vmem:[#allocation2] sm:$0xff]
    %v263 = vld [vmem:[#allocation2 + $0x8] sm:$0xff]
    %v264 = vld [vmem:[#allocation2 + $0x10] sm:$0xff]
    %v265 = vld [vmem:[#allocation2 + $0x18] sm:$0xff]
    %v266 = vld [vmem:[#allocation2 + $0x20] sm:$0xff]
    %v267 = vld [vmem:[#allocation2 + $0x28] sm:$0xff]
    %v268 = vld [vmem:[#allocation2 + $0x30] sm:$0xff]
    %v269 = vld [vmem:[#allocation2 + $0x38] sm:$0xff]
    %v270 = vld [vmem:[#allocation2 + $0x40] sm:$0xff]
    %v271 = vld [vmem:[#allocation2 + $0x48] sm:$0xff]
    %v272 = vld [vmem:[#allocation2 + $0x50] sm:$0xff]
    %v273 = vld [vmem:[#allocation2 + $0x58] sm:$0xff]
    %v274 = vld [vmem:[#allocation2 + $0x60] sm:$0xff]
    %v275 = vld [vmem:[#allocation2 + $0x68] sm:$0xff]
    %v276 = vld [vmem:[#allocation2 + $0x70] sm:$0xff]
    %v277 = vld [vmem:[#allocation2 + $0x78] sm:$0xff]
    %v278 = vld [vmem:[%s2] sm:$0x1]
    %v280 = vperm.slane %v278, 0
    %v282 = vadd.f32 %v262, %v280
    %v283 = vadd.f32 %v263, %v280
    %v284 = vadd.f32 %v264, %v280
    %v285 = vadd.f32 %v265, %v280
    %v286 = vadd.f32 %v266, %v280
    %v287 = vadd.f32 %v267, %v280
    %v288 = vadd.f32 %v268, %v280
    %v289 = vadd.f32 %v269, %v280
    %v290 = vadd.f32 %v270, %v280
    %v291 = vadd.f32 %v271, %v280
    %v292 = vadd.f32 %v272, %v280
    %v293 = vadd.f32 %v273, %v280
    %v294 = vadd.f32 %v274, %v280
    %v295 = vadd.f32 %v275, %v280
    %v296 = vadd.f32 %v276, %v280
    %v297 = vadd.f32 %v277, %v280
    %v298 = vpack.c.bf16 %v282, %v282
    %v299 = vpack.c.bf16 %v283, %v283
    %v300 = vpack.c.bf16 %v284, %v284
    %v301 = vpack.c.bf16 %v285, %v285
    %v302 = vpack.c.bf16 %v286, %v286
    %v303 = vpack.c.bf16 %v287, %v287
    %v304 = vpack.c.bf16 %v288, %v288
    %v305 = vpack.c.bf16 %v289, %v289
    %v306 = vpack.c.bf16 %v290, %v290
    %v307 = vpack.c.bf16 %v291, %v291
    %v308 = vpack.c.bf16 %v292, %v292
    %v309 = vpack.c.bf16 %v293, %v293
    %v310 = vpack.c.bf16 %v294, %v294
    %v311 = vpack.c.bf16 %v295, %v295
    %v312 = vpack.c.bf16 %v296, %v296
    %v313 = vpack.c.bf16 %v297, %v297
    %314 = vst [vmem:[%s3] sm:$0xf] %v298
    %315 = vst [vmem:[%s3 + $0x4] sm:$0xf] %v299
    %316 = vst [vmem:[%s3 + $0x8] sm:$0xf] %v300
    %317 = vst [vmem:[%s3 + $0xc] sm:$0xf] %v301
    %318 = vst [vmem:[%s3 + $0x10] sm:$0xf] %v302
    %319 = vst [vmem:[%s3 + $0x14] sm:$0xf] %v303
    %320 = vst [vmem:[%s3 + $0x18] sm:$0xf] %v304
    %321 = vst [vmem:[%s3 + $0x1c] sm:$0xf] %v305
    %322 = vst [vmem:[%s3 + $0x20] sm:$0xf] %v306
    %323 = vst [vmem:[%s3 + $0x24] sm:$0xf] %v307
    %324 = vst [vmem:[%s3 + $0x28] sm:$0xf] %v308
    %325 = vst [vmem:[%s3 + $0x2c] sm:$0xf] %v309
    %326 = vst [vmem:[%s3 + $0x30] sm:$0xf] %v310
    %327 = vst [vmem:[%s3 + $0x34] sm:$0xf] %v311
    %328 = vst [vmem:[%s3 + $0x38] sm:$0xf] %v312
    %329 = vst [vmem:[%s3 + $0x3c] sm:$0xf] %v313
  $region21: #{wideresnet_block_forward.6} parent=0 // pred_fallthru
    _
  // Predicated region
  $region22: #{wideresnet_block_forward.6} parent=0 // pred_check
    _
  $region23: #{wideresnet_block_forward.6} parent=0 // pred_check_branch
    %331 = sbr.rel (0) target = $region25
  $region24: #{wideresnet_block_forward.6} parent=0 // pred_region
    _
  $region25: #{wideresnet_block_forward.6} parent=0 // pred_fallthru
    _
  // Predicated region
  $region26: #{wideresnet_block_forward.6} parent=0 // pred_check
    _
  $region27: #{wideresnet_block_forward.6} parent=0 // pred_check_branch
    %333 = sbr.rel (0) target = $region29
  $region28: #{wideresnet_block_forward.6} parent=0 // pred_region
    _
  $region29: #{wideresnet_block_forward.6} parent=0 // pred_fallthru
    _

// kernel: wideresnet_block_forward.7
$region0: #{wideresnet_block_forward.7}
  #allocation0 [shape = 'u32[]', space=smem, size = 0x4, offset = 0x4, fixed_abs, tag = 'smem constant byte address 0x4 - core index']
  #allocation1 [shape = 'u32[72,128]{1,0:T(1,128)}', space=vmem, size = 0x9000, scoped, tag = 'internal scratch']
  #allocation2 [shape = 'f32[128,128]{1,0:T(8,128)}', space=vmem, size = 0x10000, scoped, tag = 'scratch operand']
  %s0 = inlined_call_operand.vmem [shape: bf16[128,128], index: 0, kind: input, shape index: {}]
  %s1 = inlined_call_operand.vmem [shape: bf16[128,128], index: 1, kind: input, shape index: {}]
  %s2 = inlined_call_operand.vmem [shape: f32[1,128], index: 2, kind: input, shape index: {}]
  %s3 = inlined_call_operand.vmem [shape: bf16[128,128], index: 3, kind: input, shape index: {}]
  %s4 = inlined_call_operand.vmem [shape: f32[128,128], index: 4, kind: output, shape index: {}]
  %s5 = sld [smem:[#allocation0]]
  $region34: #{wideresnet_block_forward.7} parent=0
    _
  %s7 = ssub.s32 1, %s5
  %s8 = scalar_select 0, %s7, %s5
  // Predicated region
  $region2: #{wideresnet_block_forward.7} parent=0 // pred_check
    _
  $region3: #{wideresnet_block_forward.7} parent=0 // pred_check_branch
    %10 = sbr.rel (0) target = $region5
  $region4: #{wideresnet_block_forward.7} parent=0 // pred_region
    _
  $region5: #{wideresnet_block_forward.7} parent=0 // pred_fallthru
    _
  // Predicated region
  $region6: #{wideresnet_block_forward.7} parent=0 // pred_check
    _
  $region7: #{wideresnet_block_forward.7} parent=0 // pred_check_branch
    %12 = sbr.rel (0) target = $region9
  $region8: #{wideresnet_block_forward.7} parent=0 // pred_region
    _
  $region9: #{wideresnet_block_forward.7} parent=0 // pred_fallthru
    _
  // Predicated region
  $region10: #{wideresnet_block_forward.7} parent=0 // pred_check
    _
  $region11: #{wideresnet_block_forward.7} parent=0 // pred_check_branch
    %14 = sbr.rel (0) target = $region13
  $region12: #{wideresnet_block_forward.7} parent=0 // pred_region
    _
  $region13: #{wideresnet_block_forward.7} parent=0 // pred_fallthru
    _
  // Predicated region
  $region14: #{wideresnet_block_forward.7} parent=0 // pred_check
    _
  $region15: #{wideresnet_block_forward.7} parent=0 // pred_check_branch
    %16 = sbr.rel (0) target = $region17
  $region16: #{wideresnet_block_forward.7} parent=0 // pred_region
    _
  $region17: #{wideresnet_block_forward.7} parent=0 // pred_fallthru
    _
  %p17 = scmp.eq.s32.totalorder 0, 0
  // Predicated region
  $region18: #{wideresnet_block_forward.7} parent=0 // pred_check
    %p18 = pneg %p17
  $region19: #{wideresnet_block_forward.7} parent=0 // pred_check_branch
    %20 = sbr.rel (%p18) target = $region21
  $region20: #{wideresnet_block_forward.7} parent=0 // pred_region
    %21 = vst [vmem:[#allocation2] sm:$0xff] 0.0
    %22 = vst [vmem:[#allocation2 + $0x8] sm:$0xff] 0.0
    %23 = vst [vmem:[#allocation2 + $0x10] sm:$0xff] 0.0
    %24 = vst [vmem:[#allocation2 + $0x18] sm:$0xff] 0.0
    %25 = vst [vmem:[#allocation2 + $0x20] sm:$0xff] 0.0
    %26 = vst [vmem:[#allocation2 + $0x28] sm:$0xff] 0.0
    %27 = vst [vmem:[#allocation2 + $0x30] sm:$0xff] 0.0
    %28 = vst [vmem:[#allocation2 + $0x38] sm:$0xff] 0.0
    %29 = vst [vmem:[#allocation2 + $0x40] sm:$0xff] 0.0
    %30 = vst [vmem:[#allocation2 + $0x48] sm:$0xff] 0.0
    %31 = vst [vmem:[#allocation2 + $0x50] sm:$0xff] 0.0
    %32 = vst [vmem:[#allocation2 + $0x58] sm:$0xff] 0.0
    %33 = vst [vmem:[#allocation2 + $0x60] sm:$0xff] 0.0
    %34 = vst [vmem:[#allocation2 + $0x68] sm:$0xff] 0.0
    %35 = vst [vmem:[#allocation2 + $0x70] sm:$0xff] 0.0
    %36 = vst [vmem:[#allocation2 + $0x78] sm:$0xff] 0.0
  $region21: #{wideresnet_block_forward.7} parent=0 // pred_fallthru
    _
  %v37 = vld [vmem:[#allocation2] sm:$0xff]
  %v38 = vld [vmem:[#allocation2 + $0x8] sm:$0xff]
  %v39 = vld [vmem:[#allocation2 + $0x10] sm:$0xff]
  %v40 = vld [vmem:[#allocation2 + $0x18] sm:$0xff]
  %v41 = vld [vmem:[#allocation2 + $0x20] sm:$0xff]
  %v42 = vld [vmem:[#allocation2 + $0x28] sm:$0xff]
  %v43 = vld [vmem:[#allocation2 + $0x30] sm:$0xff]
  %v44 = vld [vmem:[#allocation2 + $0x38] sm:$0xff]
  %v45 = vld [vmem:[#allocation2 + $0x40] sm:$0xff]
  %v46 = vld [vmem:[#allocation2 + $0x48] sm:$0xff]
  %v47 = vld [vmem:[#allocation2 + $0x50] sm:$0xff]
  %v48 = vld [vmem:[#allocation2 + $0x58] sm:$0xff]
  %v49 = vld [vmem:[#allocation2 + $0x60] sm:$0xff]
  %v50 = vld [vmem:[#allocation2 + $0x68] sm:$0xff]
  %v51 = vld [vmem:[#allocation2 + $0x70] sm:$0xff]
  %v52 = vld [vmem:[#allocation2 + $0x78] sm:$0xff]
  %v53 = vld [vmem:[%s0] sm:$0xf]
  %v54 = vld [vmem:[%s0 + $0x4] sm:$0xf]
  %v55 = vld [vmem:[%s0 + $0x8] sm:$0xf]
  %v56 = vld [vmem:[%s0 + $0xc] sm:$0xf]
  %v57 = vld [vmem:[%s0 + $0x10] sm:$0xf]
  %v58 = vld [vmem:[%s0 + $0x14] sm:$0xf]
  %v59 = vld [vmem:[%s0 + $0x18] sm:$0xf]
  %v60 = vld [vmem:[%s0 + $0x1c] sm:$0xf]
  %v61 = vld [vmem:[%s0 + $0x20] sm:$0xf]
  %v62 = vld [vmem:[%s0 + $0x24] sm:$0xf]
  %v63 = vld [vmem:[%s0 + $0x28] sm:$0xf]
  %v64 = vld [vmem:[%s0 + $0x2c] sm:$0xf]
  %v65 = vld [vmem:[%s0 + $0x30] sm:$0xf]
  %v66 = vld [vmem:[%s0 + $0x34] sm:$0xf]
  %v67 = vld [vmem:[%s0 + $0x38] sm:$0xf]
  %v68 = vld [vmem:[%s0 + $0x3c] sm:$0xf]
  %v69 = vld [vmem:[%s1] sm:$0xf]
  %v70 = vld [vmem:[%s1 + $0x4] sm:$0xf]
  %v71 = vld [vmem:[%s1 + $0x8] sm:$0xf]
  %v72 = vld [vmem:[%s1 + $0xc] sm:$0xf]
  %v73 = vld [vmem:[%s1 + $0x10] sm:$0xf]
  %v74 = vld [vmem:[%s1 + $0x14] sm:$0xf]
  %v75 = vld [vmem:[%s1 + $0x18] sm:$0xf]
  %v76 = vld [vmem:[%s1 + $0x1c] sm:$0xf]
  %v77 = vld [vmem:[%s1 + $0x20] sm:$0xf]
  %v78 = vld [vmem:[%s1 + $0x24] sm:$0xf]
  %v79 = vld [vmem:[%s1 + $0x28] sm:$0xf]
  %v80 = vld [vmem:[%s1 + $0x2c] sm:$0xf]
  %v81 = vld [vmem:[%s1 + $0x30] sm:$0xf]
  %v82 = vld [vmem:[%s1 + $0x34] sm:$0xf]
  %v83 = vld [vmem:[%s1 + $0x38] sm:$0xf]
  %v84 = vld [vmem:[%s1 + $0x3c] sm:$0xf]
  %v101 = vunpack.c.l.b16 %v53
  %v102 = vunpack.c.l.b16 %v54
  %v103 = vunpack.c.l.b16 %v55
  %v104 = vunpack.c.l.b16 %v56
  %v105 = vunpack.c.l.b16 %v57
  %v106 = vunpack.c.l.b16 %v58
  %v107 = vunpack.c.l.b16 %v59
  %v108 = vunpack.c.l.b16 %v60
  %v109 = vunpack.c.l.b16 %v61
  %v110 = vunpack.c.l.b16 %v62
  %v111 = vunpack.c.l.b16 %v63
  %v112 = vunpack.c.l.b16 %v64
  %v113 = vunpack.c.l.b16 %v65
  %v114 = vunpack.c.l.b16 %v66
  %v115 = vunpack.c.l.b16 %v67
  %v116 = vunpack.c.l.b16 %v68
  %v117 = vpack.c.b16 %v102, %v101
  %v118 = vpack.c.b16 %v104, %v103
  %v119 = vpack.c.b16 %v106, %v105
  %v120 = vpack.c.b16 %v108, %v107
  %v121 = vpack.c.b16 %v110, %v109
  %v122 = vpack.c.b16 %v112, %v111
  %v123 = vpack.c.b16 %v114, %v113
  %v124 = vpack.c.b16 %v116, %v115
  %v149 = vunpack.c.l.b16 %v69
  %v150 = vunpack.c.l.b16 %v70
  %v151 = vunpack.c.l.b16 %v71
  %v152 = vunpack.c.l.b16 %v72
  %v153 = vunpack.c.l.b16 %v73
  %v154 = vunpack.c.l.b16 %v74
  %v155 = vunpack.c.l.b16 %v75
  %v156 = vunpack.c.l.b16 %v76
  %v157 = vunpack.c.l.b16 %v77
  %v158 = vunpack.c.l.b16 %v78
  %v159 = vunpack.c.l.b16 %v79
  %v160 = vunpack.c.l.b16 %v80
  %v161 = vunpack.c.l.b16 %v81
  %v162 = vunpack.c.l.b16 %v82
  %v163 = vunpack.c.l.b16 %v83
  %v164 = vunpack.c.l.b16 %v84
  %v165 = vpack.c.b16 %v150, %v149
  %v166 = vpack.c.b16 %v152, %v151
  %v167 = vpack.c.b16 %v154, %v153
  %v168 = vpack.c.b16 %v156, %v155
  %v169 = vpack.c.b16 %v158, %v157
  %v170 = vpack.c.b16 %v160, %v159
  %v171 = vpack.c.b16 %v162, %v161
  %v172 = vpack.c.b16 %v164, %v163
  %181 = vmatpush.bf16.msra.mxu0 %v172
  %182 = vmatpush.bf16.msra.mxu0 %v171
  %183 = vmatpush.bf16.msra.mxu0 %v170
  %184 = vmatpush.bf16.msra.mxu0 %v169
  %185 = vmatpush.bf16.msra.mxu0 %v168
  %186 = vmatpush.bf16.msra.mxu0 %v167
  %187 = vmatpush.bf16.msra.mxu0 %v166
  %188 = vmatpush.bf16.msra.mxu0 %v165
  %189 = vmatmul.bf16.gmra.mxu0 %v117
  %v190 = vpop.f32.mrf.mxu0
  %v191 = vadd.f32 0.0, %v190
  %v192 = vpop.f32.mrf.mxu0
  %v193 = vadd.f32 0.0, %v192
  %194 = vmatmul.bf16.gmra.mxu0 %v118
  %v195 = vpop.f32.mrf.mxu0
  %v196 = vadd.f32 0.0, %v195
  %v197 = vpop.f32.mrf.mxu0
  %v198 = vadd.f32 0.0, %v197
  %199 = vmatmul.bf16.gmra.mxu0 %v119
  %v200 = vpop.f32.mrf.mxu0
  %v201 = vadd.f32 0.0, %v200
  %v202 = vpop.f32.mrf.mxu0
  %v203 = vadd.f32 0.0, %v202
  %204 = vmatmul.bf16.gmra.mxu0 %v120
  %v205 = vpop.f32.mrf.mxu0
  %v206 = vadd.f32 0.0, %v205
  %v207 = vpop.f32.mrf.mxu0
  %v208 = vadd.f32 0.0, %v207
  %209 = vmatmul.bf16.gmra.mxu0 %v121
  %v210 = vpop.f32.mrf.mxu0
  %v211 = vadd.f32 0.0, %v210
  %v212 = vpop.f32.mrf.mxu0
  %v213 = vadd.f32 0.0, %v212
  %214 = vmatmul.bf16.gmra.mxu0 %v122
  %v215 = vpop.f32.mrf.mxu0
  %v216 = vadd.f32 0.0, %v215
  %v217 = vpop.f32.mrf.mxu0
  %v218 = vadd.f32 0.0, %v217
  %219 = vmatmul.bf16.gmra.mxu0 %v123
  %v220 = vpop.f32.mrf.mxu0
  %v221 = vadd.f32 0.0, %v220
  %v222 = vpop.f32.mrf.mxu0
  %v223 = vadd.f32 0.0, %v222
  %224 = vmatmul.bf16.gmra.mxu0 %v124
  %v225 = vpop.f32.mrf.mxu0
  %v226 = vadd.f32 0.0, %v225
  %v227 = vpop.f32.mrf.mxu0
  %v228 = vadd.f32 0.0, %v227
  %229 = vdwg.mxu0
  %v230 = vadd.f32 %v37, %v191
  %v231 = vadd.f32 %v38, %v193
  %v232 = vadd.f32 %v39, %v196
  %v233 = vadd.f32 %v40, %v198
  %v234 = vadd.f32 %v41, %v201
  %v235 = vadd.f32 %v42, %v203
  %v236 = vadd.f32 %v43, %v206
  %v237 = vadd.f32 %v44, %v208
  %v238 = vadd.f32 %v45, %v211
  %v239 = vadd.f32 %v46, %v213
  %v240 = vadd.f32 %v47, %v216
  %v241 = vadd.f32 %v48, %v218
  %v242 = vadd.f32 %v49, %v221
  %v243 = vadd.f32 %v50, %v223
  %v244 = vadd.f32 %v51, %v226
  %v245 = vadd.f32 %v52, %v228
  %246 = vst [vmem:[#allocation2] sm:$0xff] %v230
  %247 = vst [vmem:[#allocation2 + $0x8] sm:$0xff] %v231
  %248 = vst [vmem:[#allocation2 + $0x10] sm:$0xff] %v232
  %249 = vst [vmem:[#allocation2 + $0x18] sm:$0xff] %v233
  %250 = vst [vmem:[#allocation2 + $0x20] sm:$0xff] %v234
  %251 = vst [vmem:[#allocation2 + $0x28] sm:$0xff] %v235
  %252 = vst [vmem:[#allocation2 + $0x30] sm:$0xff] %v236
  %253 = vst [vmem:[#allocation2 + $0x38] sm:$0xff] %v237
  %254 = vst [vmem:[#allocation2 + $0x40] sm:$0xff] %v238
  %255 = vst [vmem:[#allocation2 + $0x48] sm:$0xff] %v239
  %256 = vst [vmem:[#allocation2 + $0x50] sm:$0xff] %v240
  %257 = vst [vmem:[#allocation2 + $0x58] sm:$0xff] %v241
  %258 = vst [vmem:[#allocation2 + $0x60] sm:$0xff] %v242
  %259 = vst [vmem:[#allocation2 + $0x68] sm:$0xff] %v243
  %260 = vst [vmem:[#allocation2 + $0x70] sm:$0xff] %v244
  %261 = vst [vmem:[#allocation2 + $0x78] sm:$0xff] %v245
  // Predicated region
  $region22: #{wideresnet_block_forward.7} parent=0 // pred_check
    %p262 = pneg %p17
  $region23: #{wideresnet_block_forward.7} parent=0 // pred_check_branch
    %264 = sbr.rel (%p262) target = $region25
  $region24: #{wideresnet_block_forward.7} parent=0 // pred_region
    %v265 = vld [vmem:[#allocation2] sm:$0xff]
    %v266 = vld [vmem:[#allocation2 + $0x8] sm:$0xff]
    %v267 = vld [vmem:[#allocation2 + $0x10] sm:$0xff]
    %v268 = vld [vmem:[#allocation2 + $0x18] sm:$0xff]
    %v269 = vld [vmem:[#allocation2 + $0x20] sm:$0xff]
    %v270 = vld [vmem:[#allocation2 + $0x28] sm:$0xff]
    %v271 = vld [vmem:[#allocation2 + $0x30] sm:$0xff]
    %v272 = vld [vmem:[#allocation2 + $0x38] sm:$0xff]
    %v273 = vld [vmem:[#allocation2 + $0x40] sm:$0xff]
    %v274 = vld [vmem:[#allocation2 + $0x48] sm:$0xff]
    %v275 = vld [vmem:[#allocation2 + $0x50] sm:$0xff]
    %v276 = vld [vmem:[#allocation2 + $0x58] sm:$0xff]
    %v277 = vld [vmem:[#allocation2 + $0x60] sm:$0xff]
    %v278 = vld [vmem:[#allocation2 + $0x68] sm:$0xff]
    %v279 = vld [vmem:[#allocation2 + $0x70] sm:$0xff]
    %v280 = vld [vmem:[#allocation2 + $0x78] sm:$0xff]
    %v281 = vld [vmem:[%s2] sm:$0x1]
    %v283 = vperm.slane %v281, 0
    %v285 = vadd.f32 %v265, %v283
    %v286 = vadd.f32 %v266, %v283
    %v287 = vadd.f32 %v267, %v283
    %v288 = vadd.f32 %v268, %v283
    %v289 = vadd.f32 %v269, %v283
    %v290 = vadd.f32 %v270, %v283
    %v291 = vadd.f32 %v271, %v283
    %v292 = vadd.f32 %v272, %v283
    %v293 = vadd.f32 %v273, %v283
    %v294 = vadd.f32 %v274, %v283
    %v295 = vadd.f32 %v275, %v283
    %v296 = vadd.f32 %v276, %v283
    %v297 = vadd.f32 %v277, %v283
    %v298 = vadd.f32 %v278, %v283
    %v299 = vadd.f32 %v279, %v283
    %v300 = vadd.f32 %v280, %v283
    %v301 = vld [vmem:[%s3] sm:$0xf]
    %v302 = vld [vmem:[%s3 + $0x4] sm:$0xf]
    %v303 = vld [vmem:[%s3 + $0x8] sm:$0xf]
    %v304 = vld [vmem:[%s3 + $0xc] sm:$0xf]
    %v305 = vld [vmem:[%s3 + $0x10] sm:$0xf]
    %v306 = vld [vmem:[%s3 + $0x14] sm:$0xf]
    %v307 = vld [vmem:[%s3 + $0x18] sm:$0xf]
    %v308 = vld [vmem:[%s3 + $0x1c] sm:$0xf]
    %v309 = vld [vmem:[%s3 + $0x20] sm:$0xf]
    %v310 = vld [vmem:[%s3 + $0x24] sm:$0xf]
    %v311 = vld [vmem:[%s3 + $0x28] sm:$0xf]
    %v312 = vld [vmem:[%s3 + $0x2c] sm:$0xf]
    %v313 = vld [vmem:[%s3 + $0x30] sm:$0xf]
    %v314 = vld [vmem:[%s3 + $0x34] sm:$0xf]
    %v315 = vld [vmem:[%s3 + $0x38] sm:$0xf]
    %v316 = vld [vmem:[%s3 + $0x3c] sm:$0xf]
    %v317 = vunpack.c.l.bf16 %v301
    %v318 = vunpack.c.l.bf16 %v302
    %v319 = vunpack.c.l.bf16 %v303
    %v320 = vunpack.c.l.bf16 %v304
    %v321 = vunpack.c.l.bf16 %v305
    %v322 = vunpack.c.l.bf16 %v306
    %v323 = vunpack.c.l.bf16 %v307
    %v324 = vunpack.c.l.bf16 %v308
    %v325 = vunpack.c.l.bf16 %v309
    %v326 = vunpack.c.l.bf16 %v310
    %v327 = vunpack.c.l.bf16 %v311
    %v328 = vunpack.c.l.bf16 %v312
    %v329 = vunpack.c.l.bf16 %v313
    %v330 = vunpack.c.l.bf16 %v314
    %v331 = vunpack.c.l.bf16 %v315
    %v332 = vunpack.c.l.bf16 %v316
    %v333 = vadd.f32 %v285, %v317
    %v334 = vadd.f32 %v286, %v318
    %v335 = vadd.f32 %v287, %v319
    %v336 = vadd.f32 %v288, %v320
    %v337 = vadd.f32 %v289, %v321
    %v338 = vadd.f32 %v290, %v322
    %v339 = vadd.f32 %v291, %v323
    %v340 = vadd.f32 %v292, %v324
    %v341 = vadd.f32 %v293, %v325
    %v342 = vadd.f32 %v294, %v326
    %v343 = vadd.f32 %v295, %v327
    %v344 = vadd.f32 %v296, %v328
    %v345 = vadd.f32 %v297, %v329
    %v346 = vadd.f32 %v298, %v330
    %v347 = vadd.f32 %v299, %v331
    %v348 = vadd.f32 %v300, %v332
    %349 = vst [vmem:[%s4] sm:$0xff] %v333
    %350 = vst [vmem:[%s4 + $0x8] sm:$0xff] %v334
    %351 = vst [vmem:[%s4 + $0x10] sm:$0xff] %v335
    %352 = vst [vmem:[%s4 + $0x18] sm:$0xff] %v336
    %353 = vst [vmem:[%s4 + $0x20] sm:$0xff] %v337
    %354 = vst [vmem:[%s4 + $0x28] sm:$0xff] %v338
    %355 = vst [vmem:[%s4 + $0x30] sm:$0xff] %v339
    %356 = vst [vmem:[%s4 + $0x38] sm:$0xff] %v340
    %357 = vst [vmem:[%s4 + $0x40] sm:$0xff] %v341
    %358 = vst [vmem:[%s4 + $0x48] sm:$0xff] %v342
    %359 = vst [vmem:[%s4 + $0x50] sm:$0xff] %v343
    %360 = vst [vmem:[%s4 + $0x58] sm:$0xff] %v344
    %361 = vst [vmem:[%s4 + $0x60] sm:$0xff] %v345
    %362 = vst [vmem:[%s4 + $0x68] sm:$0xff] %v346
    %363 = vst [vmem:[%s4 + $0x70] sm:$0xff] %v347
    %364 = vst [vmem:[%s4 + $0x78] sm:$0xff] %v348
  $region25: #{wideresnet_block_forward.7} parent=0 // pred_fallthru
    _
  // Predicated region
  $region26: #{wideresnet_block_forward.7} parent=0 // pred_check
    _
  $region27: #{wideresnet_block_forward.7} parent=0 // pred_check_branch
    %366 = sbr.rel (0) target = $region29
  $region28: #{wideresnet_block_forward.7} parent=0 // pred_region
    _
  $region29: #{wideresnet_block_forward.7} parent=0 // pred_fallthru
    _
  // Predicated region
  $region30: #{wideresnet_block_forward.7} parent=0 // pred_check
    _
  $region31: #{wideresnet_block_forward.7} parent=0 // pred_check_branch
    %368 = sbr.rel (0) target = $region33
  $region32: #{wideresnet_block_forward.7} parent=0 // pred_region
    _
  $region33: #{wideresnet_block_forward.7} parent=0 // pred_fallthru
    _

</llo_original>
